<compile_context>
chip_gen: v7x
topology: tpu7x:2x2x1
jax: 0.10.0
libtpu: 0.0.40
codegen_flags: <defaults>
</compile_context>

<pallas_src>
import jax
import jax.numpy as jnp
from jax.experimental import pallas as pl
from jax.experimental.pallas import tpu as pltpu


def _round_up(n, m):
    return ((n + m - 1) // m) * m


def _discriminator_kernel(x_ref, w1_ref, b1_ref, w2_ref, b2_ref,
                          h_ref, logit_ref, prob_ref):
    # Hidden layer: Linear (bf16 MXU operands, f32 accumulate) + LeakyReLU(0.2).
    h = jnp.dot(x_ref[...], w1_ref[...],
                preferred_element_type=jnp.float32) + b1_ref[...]
    h = jnp.where(h > 0, h, 0.2 * h)                 # LeakyReLU(0.2)
    h_ref[...] = h.astype(h_ref.dtype)

    # Logit head (H -> 1): VPU multiply + lane reduce (avoids N=1 MXU matmul).
    b2 = b2_ref[0, 0]                                # scalar from SMEM
    logits = jnp.sum(h * w2_ref[...], axis=-1, keepdims=True) + b2
    logit_ref[...] = logits.astype(logit_ref.dtype)
    prob_ref[...] = jax.nn.sigmoid(logits).astype(prob_ref.dtype)


def _choose_tile_b(B, requested, E, H):
    """Pick a sublane-aligned batch tile.

    Keeps >=2 grid steps when the batch allows it (v7x megacore: two
    TensorCores need >=2 'parallel' steps) and shrinks until the
    double-buffered streamed tiles + resident weights fit scoped VMEM.
    """
    tb = max(8, min(_round_up(requested, 8), _round_up(B, 8)))
    if B > 8 and pl.cdiv(B, tb) < 2:
        tb = _round_up(pl.cdiv(B, 2), 8)

    def est_vmem(t):
        # 2 pipeline buffers per streamed array + (pessimistic) 2x weights.
        return 2 * (t * (E * 2 + H * 4 + 8) + E * H * 2 + 2 * H * 4)

    while tb > 8 and est_vmem(tb) > (56 << 20):      # leave headroom under v7x 64 MiB
        tb = _round_up(tb // 2, 8)
    return tb, est_vmem(tb)


def discriminator_forward(x, w1, b1, w2, b2, *, tile_b=1024):
    """Discriminator forward (eval mode).

    x : (B, E) input embeddings (f32 or bf16)
    w1: (E, H) hidden Linear weight, stored (in, out) == PyTorch weight.T
    b1: (H,) or (1, H) hidden bias
    w2: (1, H) / (H,) / (H, 1) logit-head weight
    b2: scalar / (1,) / (1, 1) logit-head bias
    Returns (last_emb (B, H) f32, logits (B, 1) f32, probs (B, 1) f32).
    """
    B, E = x.shape
    H = w1.shape[1]

    # bf16 operands for the MXU; f32 bias / head / outputs.
    x_bf = jnp.asarray(x, jnp.bfloat16)
    w1_bf = jnp.asarray(w1, jnp.bfloat16)
    b1 = jnp.asarray(b1, jnp.float32).reshape(1, H)
    w2_row = jnp.asarray(w2, jnp.float32).reshape(1, H)
    b2 = jnp.asarray(b2, jnp.float32).reshape(1, 1)

    tile_b, est_vmem = _choose_tile_b(B, tile_b, E, H)
    grid = (pl.cdiv(B, tile_b),)                     # ragged last tile is masked

    out_shapes = (
        jax.ShapeDtypeStruct((B, H), jnp.float32),   # last_emb
        jax.ShapeDtypeStruct((B, 1), jnp.float32),   # logits
        jax.ShapeDtypeStruct((B, 1), jnp.float32),   # probs
    )

    grid_spec = pltpu.PrefetchScalarGridSpec(
        num_scalar_prefetch=0,
        grid=grid,
        in_specs=[
            pl.BlockSpec((tile_b, E), lambda i: (i, 0)),        # streamed x tile
            pl.BlockSpec((E, H), lambda i: (0, 0)),             # resident W1 (bf16)
            pl.BlockSpec((1, H), lambda i: (0, 0)),             # resident b1
            pl.BlockSpec((1, H), lambda i: (0, 0)),             # resident w2 row
            pl.BlockSpec(memory_space=pltpu.MemorySpace.SMEM),  # scalar b2
        ],
        out_specs=[
            pl.BlockSpec((tile_b, H), lambda i: (i, 0)),
            pl.BlockSpec((tile_b, 1), lambda i: (i, 0)),
            pl.BlockSpec((tile_b, 1), lambda i: (i, 0)),
        ],
    )

    cost = pl.CostEstimate(
        flops=2 * B * E * H + 2 * B * H,
        transcendentals=B,                            # sigmoid
        bytes_accessed=B * E * 2 + E * H * 2 + 2 * H * 4 + B * H * 4 + 2 * B * 4,
    )

    compiler_kwargs = dict(dimension_semantics=("parallel",))
    if est_vmem > (28 << 20):
        # Raise the scoped-VMEM limit above the 32 MiB default; stay under v7x 64 MiB.
        compiler_kwargs["vmem_limit_bytes"] = min(int(est_vmem * 1.2) + (2 << 20), 60 << 20)

    last_emb, logits, probs = pl.pallas_call(
        _discriminator_kernel,
        out_shape=out_shapes,
        grid_spec=grid_spec,
        cost_estimate=cost,
        compiler_params=pltpu.CompilerParams(**compiler_kwargs),
    )(x_bf, w1_bf, b1, w2_row, b2)

    return last_emb, logits, probs


def _init_params(key, emb_dim, hidden_dim):
    """Deterministic PyTorch-style (Kaiming-uniform) Linear init."""
    k1, k2, k3, k4 = jax.random.split(key, 4)
    bound1 = 1.0 / jnp.sqrt(emb_dim)
    w1 = jax.random.uniform(k1, (emb_dim, hidden_dim), jnp.float32, -bound1, bound1)
    b1 = jax.random.uniform(k2, (hidden_dim,), jnp.float32, -bound1, bound1)
    bound2 = 1.0 / jnp.sqrt(hidden_dim)
    w2 = jax.random.uniform(k3, (1, hidden_dim), jnp.float32, -bound2, bound2)
    b2 = jax.random.uniform(k4, (1,), jnp.float32, -bound2, bound2)
    return w1, b1, w2, b2


if __name__ == "__main__":
    # Small shapes consistent with the module (emb_dim == hidden_dims[0]).
    # B=500 is deliberately NOT a tile multiple to exercise the ragged last
    # tile (no wrapper pad / slice anymore).
    B, E, H = 500, 256, 256

    key = jax.random.PRNGKey(0)
    kx, kp = jax.random.split(key)
    x = jax.random.normal(kx, (B, E), dtype=jnp.float32)
    w1, b1, w2, b2 = _init_params(kp, E, H)

    last_emb, logits, probs = discriminator_forward(x, w1, b1, w2, b2)
    jax.block_until_ready((last_emb, logits, probs))
    assert last_emb.shape == (B, H) and logits.shape == (B, 1) and probs.shape == (B, 1)

    # Reference 1: same bf16-operand / f32-accumulate matmul semantics (tight tol).
    xb, w1b = x.astype(jnp.bfloat16), w1.astype(jnp.bfloat16)
    h_bf = jnp.dot(xb, w1b, preferred_element_type=jnp.float32) + b1.reshape(1, H)
    h_bf = jnp.where(h_bf > 0, h_bf, 0.2 * h_bf)
    lg_bf = jnp.sum(h_bf * w2.reshape(1, H), axis=-1, keepdims=True) + b2.reshape(1, 1)
    pr_bf = jax.nn.sigmoid(lg_bf)
    assert jnp.allclose(last_emb, h_bf, atol=2e-3, rtol=2e-3)
    assert jnp.allclose(logits, lg_bf, atol=2e-3, rtol=2e-3)
    assert jnp.allclose(probs, pr_bf, atol=1e-3)

    # Reference 2: full-f32 module semantics (loose tol: bf16 MXU operands).
    h32 = x @ w1 + b1.reshape(1, H)
    h32 = jnp.where(h32 > 0, h32, 0.2 * h32)
    lg32 = jnp.sum(h32 * w2.reshape(1, H), axis=-1, keepdims=True) + b2.reshape(1, 1)
    pr32 = jax.nn.sigmoid(lg32)
    assert jnp.allclose(last_emb, h32, atol=3e-2, rtol=3e-2)
    assert jnp.allclose(logits, lg32, atol=3e-2, rtol=3e-2)
    assert jnp.allclose(probs, pr32, atol=1e-2)

    print("KERNEL_OK")
</pallas_src>

<mosaic_0001>
module attributes {stable_mosaic.version = 11 : i64} {
  func.func @_discriminator_kernel(%arg0: i32, %arg1: memref<256x256xbf16, #tpu.memory_space<vmem>>, %arg2: memref<256x256xbf16, #tpu.memory_space<vmem>>, %arg3: memref<1x256xf32, #tpu.memory_space<vmem>>, %arg4: memref<1x256xf32, #tpu.memory_space<vmem>>, %arg5: memref<1x1xf32, #tpu.memory_space<smem>>, %arg6: memref<256x256xf32, #tpu.memory_space<vmem>>, %arg7: memref<256x1xf32, #tpu.memory_space<vmem>>, %arg8: memref<256x1xf32, #tpu.memory_space<vmem>>) attributes {dimension_semantics = [#tpu.dimension_semantics<parallel>], iteration_bounds = array<i64: 2>, scalar_prefetch = 0 : i64, scratch_operands = 0 : i64, tpu.core_type = #tpu.core_type<tc>, window_params = [{transform_indices = @transform_0, window_bounds = array<i64: 256, 256>}, {pipeline_mode = #tpu.pipeline_mode<synchronous>, transform_indices = @transform_1, window_bounds = array<i64: 256, 256>}, {pipeline_mode = #tpu.pipeline_mode<synchronous>, transform_indices = @transform_2, window_bounds = array<i64: 1, 256>}, {pipeline_mode = #tpu.pipeline_mode<synchronous>, transform_indices = @transform_3, window_bounds = array<i64: 1, 256>}, {transform_indices = @transform_4, window_bounds = array<i64: 1, 1>}, {transform_indices = @transform_5, window_bounds = array<i64: 256, 256>}, {transform_indices = @transform_6, window_bounds = array<i64: 256, 1>}, {transform_indices = @transform_7, window_bounds = array<i64: 256, 1>}]} {
    %c0 = arith.constant 0 : index
    %c0_0 = arith.constant 0 : index
    %0 = vector.load %arg1[%c0, %c0_0] : memref<256x256xbf16, #tpu.memory_space<vmem>>, vector<256x256xbf16>
    %c0_1 = arith.constant 0 : index
    %c0_2 = arith.constant 0 : index
    %1 = vector.load %arg2[%c0_1, %c0_2] : memref<256x256xbf16, #tpu.memory_space<vmem>>, vector<256x256xbf16>
    %cst = arith.constant dense<0.000000e+00> : vector<256x256xf32>
    %2 = tpu.matmul %0, %1, %cst {dimension_numbers = #tpu.dot_dimension_numbers<[1], [0], [0], [1], [0, 0, 1, 1], [], []>} : vector<256x256xbf16>, vector<256x256xbf16>, vector<256x256xf32> -> vector<256x256xf32>
    %c0_3 = arith.constant 0 : index
    %c0_4 = arith.constant 0 : index
    %3 = vector.load %arg3[%c0_3, %c0_4] : memref<1x256xf32, #tpu.memory_space<vmem>>, vector<1x256xf32>
    %4 = vector.broadcast %3 : vector<1x256xf32> to vector<256x256xf32>
    %5 = arith.addf %2, %4 : vector<256x256xf32>
    %cst_5 = arith.constant 0.000000e+00 : f32
    %6 = vector.broadcast %cst_5 : f32 to vector<256x256xf32>
    %7 = arith.cmpf ogt, %5, %6 : vector<256x256xf32>
    %cst_6 = arith.constant 2.000000e-01 : f32
    %8 = vector.broadcast %cst_6 : f32 to vector<256x256xf32>
    %9 = arith.mulf %8, %5 : vector<256x256xf32>
    %10 = arith.select %7, %5, %9 : vector<256x256xi1>, vector<256x256xf32>
    %c0_7 = arith.constant 0 : index
    %c0_8 = arith.constant 0 : index
    %11 = vector.load %arg6[%c0_7, %c0_8] : memref<256x256xf32, #tpu.memory_space<vmem>>, vector<256x256xf32>
    tpu.vector_store %arg6[%c0_7, %c0_8], %10 {strides = array<i32>} : memref<256x256xf32, #tpu.memory_space<vmem>>, vector<256x256xf32>,
    %c0_9 = arith.constant 0 : index
    %c0_10 = arith.constant 0 : index
    %12 = memref.load %arg5[%c0_9, %c0_10] : memref<1x1xf32, #tpu.memory_space<smem>>
    %c0_11 = arith.constant 0 : index
    %c0_12 = arith.constant 0 : index
    %13 = vector.load %arg4[%c0_11, %c0_12] : memref<1x256xf32, #tpu.memory_space<vmem>>, vector<1x256xf32>
    %14 = vector.broadcast %13 : vector<1x256xf32> to vector<256x256xf32>
    %15 = arith.mulf %10, %14 : vector<256x256xf32>
    %cst_13 = arith.constant dense<0.000000e+00> : vector<256xf32>
    %16 = vector.multi_reduction <add>, %15, %cst_13 [1] : vector<256x256xf32> to vector<256xf32>
    %17 = vector.shape_cast %16 : vector<256xf32> to vector<256x1xf32>
    %18 = vector.broadcast %12 : f32 to vector<256x1xf32>
    %19 = arith.addf %17, %18 : vector<256x1xf32>
    %c0_14 = arith.constant 0 : index
    %c0_15 = arith.constant 0 : index
    %20 = vector.load %arg7[%c0_14, %c0_15] : memref<256x1xf32, #tpu.memory_space<vmem>>, vector<256x1xf32>
    tpu.vector_store %arg7[%c0_14, %c0_15], %19 {strides = array<i32>} : memref<256x1xf32, #tpu.memory_space<vmem>>, vector<256x1xf32>,
    %21 = arith.negf %19 : vector<256x1xf32>
    %22 = math.exp %21 : vector<256x1xf32>
    %cst_16 = arith.constant 1.000000e+00 : f32
    %23 = vector.broadcast %cst_16 : f32 to vector<256x1xf32>
    %24 = arith.addf %23, %22 : vector<256x1xf32>
    %25 = arith.divf %23, %24 : vector<256x1xf32>
    %c0_17 = arith.constant 0 : index
    %c0_18 = arith.constant 0 : index
    %26 = vector.load %arg8[%c0_17, %c0_18] : memref<256x1xf32, #tpu.memory_space<vmem>>, vector<256x1xf32>
    tpu.vector_store %arg8[%c0_17, %c0_18], %25 {strides = array<i32>} : memref<256x1xf32, #tpu.memory_space<vmem>>, vector<256x1xf32>,
    return
  }
  func.func @transform_0(%arg0: i32) -> (i32, i32) {
    %c0_i32 = arith.constant 0 : i32
    %c0_i32_0 = arith.constant 0 : i32
    return %arg0, %c0_i32 : i32, i32
  }
  func.func @transform_1(%arg0: i32) -> (i32, i32) {
    %c0_i32 = arith.constant 0 : i32
    %c0_i32_0 = arith.constant 0 : i32
    %c0_i32_1 = arith.constant 0 : i32
    return %c0_i32, %c0_i32_0 : i32, i32
  }
  func.func @transform_2(%arg0: i32) -> (i32, i32) {
    %c0_i32 = arith.constant 0 : i32
    %c0_i32_0 = arith.constant 0 : i32
    %c0_i32_1 = arith.constant 0 : i32
    return %c0_i32, %c0_i32_0 : i32, i32
  }
  func.func @transform_3(%arg0: i32) -> (i32, i32) {
    %c0_i32 = arith.constant 0 : i32
    %c0_i32_0 = arith.constant 0 : i32
    %c0_i32_1 = arith.constant 0 : i32
    return %c0_i32, %c0_i32_0 : i32, i32
  }
  func.func @transform_4(%arg0: i32) -> (i32, i32) {
    %c0_i32 = arith.constant 0 : i32
    %c0_i32_0 = arith.constant 0 : i32
    %c0_i32_1 = arith.constant 0 : i32
    return %c0_i32, %c0_i32_0 : i32, i32
  }
  func.func @transform_5(%arg0: i32) -> (i32, i32) {
    %c0_i32 = arith.constant 0 : i32
    %c0_i32_0 = arith.constant 0 : i32
    return %arg0, %c0_i32 : i32, i32
  }
  func.func @transform_6(%arg0: i32) -> (i32, i32) {
    %c0_i32 = arith.constant 0 : i32
    %c0_i32_0 = arith.constant 0 : i32
    return %arg0, %c0_i32 : i32, i32
  }
  func.func @transform_7(%arg0: i32) -> (i32, i32) {
    %c0_i32 = arith.constant 0 : i32
    %c0_i32_0 = arith.constant 0 : i32
    return %arg0, %c0_i32 : i32, i32
  }
}

</mosaic_0001>

<llo_original>
// kernel: tpu_custom_call.1
$region0: #{tpu_custom_call.1}
  #allocation0 [shape = 'u32[]', space=smem, size = 0x4, offset = 0x4, fixed_abs, tag = 'smem constant byte address 0x4 - core index']
  #allocation1 [shape = 'u32[144,128]{1,0:T(1,128)}', space=vmem, size = 0x12000, scoped, tag = 'internal scratch']
  #allocation2 [shape = 'f32[1,1]{1,0:T(1,128)S(6)}', space=smem, size = 0x200, scoped, tag = 'scoped memory for tpu_custom_call.1']
  %s0 = inlined_call_operand.hbm [shape: bf16[500,256], index: 0, kind: input, shape index: {}]
  %s1 = inlined_call_operand.hbm [shape: bf16[256,256], index: 1, kind: input, shape index: {}]
  %s2 = inlined_call_operand.vmem [shape: f32[1,256], index: 2, kind: input, shape index: {}]
  %s3 = inlined_call_operand.vmem [shape: f32[1,256], index: 3, kind: input, shape index: {}]
  %s4 = inlined_call_operand.<no memory space> [shape: f32[1,1], index: 4, kind: input, shape index: {}]
  %s5 = inlined_call_operand.hbm [shape: f32[500,256], index: 5, kind: output, shape index: {0}]
  %s6 = inlined_call_operand.vmem [shape: f32[500,1], index: 6, kind: output, shape index: {1}]
  %s7 = inlined_call_operand.vmem [shape: f32[500,1], index: 7, kind: output, shape index: {2}]
  %8 = xla_tuple %s5, %s6, %s7
  %s9 = sld [smem:[#allocation0]]
  $region173: #{tpu_custom_call.1} parent=0
    _
  %s11 = ssub.s32 1, %s9
  %s12 = scalar_select 0, %s11, %s9
  %13 = sst [smem:[#allocation2]] %s4
  $region1: #{tpu_custom_call.1} parent=0
    #allocation3 [shape = 'u8[262144]{0}', space=vmem, size = 0x40000, scoped, tag = 'input window, operand 0']
    #allocation4 [shape = 's32[2]{0}', space=sflag, size = 0x8, scoped, tag = 'scoped memory for tpu_custom_call.1']
    #allocation5 [shape = 's32[2]{0}', space=sflag, size = 0x8, scoped, tag = 'scoped memory for tpu_custom_call.1']
    #allocation6 [shape = 'u8[131072]{0}', space=vmem, size = 0x20000, scoped, tag = 'input window, operand 1, single buffered']
    #allocation7 [shape = 's32[1]{0}', space=sflag, size = 0x4, scoped, tag = 'scoped memory for tpu_custom_call.1']
    #allocation8 [shape = 'u8[524288]{0}', space=vmem, size = 0x80000, scoped, tag = 'output window, operand 0']
    #allocation9 [shape = 'u8[262144]{0}', space=vmem, size = 0x40000, scoped, tag = 'output window, operand 1']
    #allocation10 [shape = 'u8[262144]{0}', space=vmem, size = 0x40000, scoped, tag = 'output window, operand 2']
    %14 = vsyncpa [#allocation4], 0
    %s15 = scalar_lea.sflag [#allocation4], 1
    %16 = vsyncpa %s15, 0
    %17 = vsyncpa [#allocation7], 0
    %18 = vsyncpa [#allocation5], 0
    %s19 = scalar_lea.sflag [#allocation5], 1
    %20 = vsyncpa %s19, 0
    loop: start=0, step=1, limit=4
    $region2: #{tpu_custom_call.1} parent=1 // loop_pre_header
      _
    $region3: #{tpu_custom_call.1} parent=1 // loop_header
      %s22 = sphi 0, %s26
      %p23 = scmp.ge.s32.totalorder %s22, 4
      %s32 = sphi 0, %s34
      %s35 = sphi 0, %s32
      %s36 = sphi 0, %s35
      %s52 = sphi 0, %s36
      %s56 = sphi 0, %s56
      %s58 = sphi 0, %s56
      %s59 = sphi 0, %s58
      %s73 = sphi 0, %s59
      %s77 = sphi 0, %s77
      %s79 = sphi 0, %s77
      %s80 = sphi 0, %s79
      %s94 = sphi 0, %s80
      %s98 = sphi 0, %s98
      %s100 = sphi 0, %s98
      %s101 = sphi 0, %s100
      %s115 = sphi 0, %s101
      %s119 = sphi 0, %s119
      %s121 = sphi 0, %s119
      %s122 = sphi 0, %s121
      %s136 = sphi 0, %s122
      %s142 = sphi 0, %s144
      %s145 = sphi 0, %s142
      %s146 = sphi 0, %s145
      %s162 = sphi 0, %s146
      %s168 = sphi 0, %s170
      %s171 = sphi 0, %s168
      %s172 = sphi 0, %s171
      %s188 = sphi 0, %s172
      %s194 = sphi 0, %s196
      %s197 = sphi 0, %s194
      %s198 = sphi 0, %s197
      %s214 = sphi 0, %s198
    $region4: #{tpu_custom_call.1} parent=1 // loop_header_branch
      %25 = sbr.rel (%p23) target = $region8
    $region5: #{tpu_custom_call.1} parent=1 // loop_body
      %s27 = ssub.s32 %s22, 1
      %s28 = ssub.s32 %s22, 2
      %s29 = sadd.s32 %s22, 1
      %s30 = ssub.s32 %s22, %s29
      %p31 = scmp.eq.s32.totalorder %s30, 0
      %s33 = sadd.s32 %s32, 1
      %s34 = scalar_select %p31, %s32, %s33
      %p37 = pneg %p31
      %p38 = scmp.eq.s32.totalorder %s22, 1
      %p39 = por %p37, %p38
      %p40 = scmp.ne.s32.totalorder %s32, %s35
      %p41 = scmp.eq.s32.totalorder %s22, 0
      %p42 = por %p40, %p41
      %p43 = scmp.ne.s32.totalorder %s32, %s35
      %p44 = scmp.eq.s32.totalorder %s27, 1
      %p45 = por %p43, %p44
      %p46 = scmp.ne.s32.totalorder %s35, %s36
      %p47 = scmp.eq.s32.totalorder %s27, 0
      %p48 = por %p46, %p47
      %p49 = scmp.ne.s32.totalorder %s35, %s36
      %p50 = scmp.eq.s32.totalorder %s28, 1
      %p51 = por %p49, %p50
      %p53 = scmp.ne.s32.totalorder %s36, %s52
      %p54 = scmp.eq.s32.totalorder %s28, 0
      %p55 = por %p53, %p54
      %s57 = sadd.s32 %s56, 1
      %p60 = scmp.eq.s32.totalorder %s22, 1
      %p61 = scmp.ne.s32.totalorder %s56, %s58
      %p62 = scmp.eq.s32.totalorder %s22, 0
      %p63 = por %p61, %p62
      %p64 = scmp.ne.s32.totalorder %s56, %s58
      %p65 = scmp.eq.s32.totalorder %s27, 1
      %p66 = por %p64, %p65
      %p67 = scmp.ne.s32.totalorder %s58, %s59
      %p68 = scmp.eq.s32.totalorder %s27, 0
      %p69 = por %p67, %p68
      %p70 = scmp.ne.s32.totalorder %s58, %s59
      %p71 = scmp.eq.s32.totalorder %s28, 1
      %p72 = por %p70, %p71
      %p74 = scmp.ne.s32.totalorder %s59, %s73
      %p75 = scmp.eq.s32.totalorder %s28, 0
      %p76 = por %p74, %p75
      %s78 = sadd.s32 %s77, 1
      %p81 = scmp.eq.s32.totalorder %s22, 1
      %p82 = scmp.ne.s32.totalorder %s77, %s79
      %p83 = scmp.eq.s32.totalorder %s22, 0
      %p84 = por %p82, %p83
      %p85 = scmp.ne.s32.totalorder %s77, %s79
      %p86 = scmp.eq.s32.totalorder %s27, 1
      %p87 = por %p85, %p86
      %p88 = scmp.ne.s32.totalorder %s79, %s80
      %p89 = scmp.eq.s32.totalorder %s27, 0
      %p90 = por %p88, %p89
      %p91 = scmp.ne.s32.totalorder %s79, %s80
      %p92 = scmp.eq.s32.totalorder %s28, 1
      %p93 = por %p91, %p92
      %p95 = scmp.ne.s32.totalorder %s80, %s94
      %p96 = scmp.eq.s32.totalorder %s28, 0
      %p97 = por %p95, %p96
      %s99 = sadd.s32 %s98, 1
      %p102 = scmp.eq.s32.totalorder %s22, 1
      %p103 = scmp.ne.s32.totalorder %s98, %s100
      %p104 = scmp.eq.s32.totalorder %s22, 0
      %p105 = por %p103, %p104
      %p106 = scmp.ne.s32.totalorder %s98, %s100
      %p107 = scmp.eq.s32.totalorder %s27, 1
      %p108 = por %p106, %p107
      %p109 = scmp.ne.s32.totalorder %s100, %s101
      %p110 = scmp.eq.s32.totalorder %s27, 0
      %p111 = por %p109, %p110
      %p112 = scmp.ne.s32.totalorder %s100, %s101
      %p113 = scmp.eq.s32.totalorder %s28, 1
      %p114 = por %p112, %p113
      %p116 = scmp.ne.s32.totalorder %s101, %s115
      %p117 = scmp.eq.s32.totalorder %s28, 0
      %p118 = por %p116, %p117
      %s120 = sadd.s32 %s119, 1
      %p123 = scmp.eq.s32.totalorder %s22, 1
      %p124 = scmp.ne.s32.totalorder %s119, %s121
      %p125 = scmp.eq.s32.totalorder %s22, 0
      %p126 = por %p124, %p125
      %p127 = scmp.ne.s32.totalorder %s119, %s121
      %p128 = scmp.eq.s32.totalorder %s27, 1
      %p129 = por %p127, %p128
      %p130 = scmp.ne.s32.totalorder %s121, %s122
      %p131 = scmp.eq.s32.totalorder %s27, 0
      %p132 = por %p130, %p131
      %p133 = scmp.ne.s32.totalorder %s121, %s122
      %p134 = scmp.eq.s32.totalorder %s28, 1
      %p135 = por %p133, %p134
      %p137 = scmp.ne.s32.totalorder %s122, %s136
      %p138 = scmp.eq.s32.totalorder %s28, 0
      %p139 = por %p137, %p138
      %s140 = ssub.s32 %s22, %s29
      %p141 = scmp.eq.s32.totalorder %s140, 0
      %s143 = sadd.s32 %s142, 1
      %s144 = scalar_select %p141, %s142, %s143
      %p147 = pneg %p141
      %p148 = scmp.eq.s32.totalorder %s22, 1
      %p149 = por %p147, %p148
      %p150 = scmp.ne.s32.totalorder %s142, %s145
      %p151 = scmp.eq.s32.totalorder %s22, 0
      %p152 = por %p150, %p151
      %p153 = scmp.ne.s32.totalorder %s142, %s145
      %p154 = scmp.eq.s32.totalorder %s27, 1
      %p155 = por %p153, %p154
      %p156 = scmp.ne.s32.totalorder %s145, %s146
      %p157 = scmp.eq.s32.totalorder %s27, 0
      %p158 = por %p156, %p157
      %p159 = scmp.ne.s32.totalorder %s145, %s146
      %p160 = scmp.eq.s32.totalorder %s28, 1
      %p161 = por %p159, %p160
      %p163 = scmp.ne.s32.totalorder %s146, %s162
      %p164 = scmp.eq.s32.totalorder %s28, 0
      %p165 = por %p163, %p164
      %s166 = ssub.s32 %s22, %s29
      %p167 = scmp.eq.s32.totalorder %s166, 0
      %s169 = sadd.s32 %s168, 1
      %s170 = scalar_select %p167, %s168, %s169
      %p173 = pneg %p167
      %p174 = scmp.eq.s32.totalorder %s22, 1
      %p175 = por %p173, %p174
      %p176 = scmp.ne.s32.totalorder %s168, %s171
      %p177 = scmp.eq.s32.totalorder %s22, 0
      %p178 = por %p176, %p177
      %p179 = scmp.ne.s32.totalorder %s168, %s171
      %p180 = scmp.eq.s32.totalorder %s27, 1
      %p181 = por %p179, %p180
      %p182 = scmp.ne.s32.totalorder %s171, %s172
      %p183 = scmp.eq.s32.totalorder %s27, 0
      %p184 = por %p182, %p183
      %p185 = scmp.ne.s32.totalorder %s171, %s172
      %p186 = scmp.eq.s32.totalorder %s28, 1
      %p187 = por %p185, %p186
      %p189 = scmp.ne.s32.totalorder %s172, %s188
      %p190 = scmp.eq.s32.totalorder %s28, 0
      %p191 = por %p189, %p190
      %s192 = ssub.s32 %s22, %s29
      %p193 = scmp.eq.s32.totalorder %s192, 0
      %s195 = sadd.s32 %s194, 1
      %s196 = scalar_select %p193, %s194, %s195
      %p199 = pneg %p193
      %p200 = scmp.eq.s32.totalorder %s22, 1
      %p201 = por %p199, %p200
      %p202 = scmp.ne.s32.totalorder %s194, %s197
      %p203 = scmp.eq.s32.totalorder %s22, 0
      %p204 = por %p202, %p203
      %p205 = scmp.ne.s32.totalorder %s194, %s197
      %p206 = scmp.eq.s32.totalorder %s27, 1
      %p207 = por %p205, %p206
      %p208 = scmp.ne.s32.totalorder %s197, %s198
      %p209 = scmp.eq.s32.totalorder %s27, 0
      %p210 = por %p208, %p209
      %p211 = scmp.ne.s32.totalorder %s197, %s198
      %p212 = scmp.eq.s32.totalorder %s28, 1
      %p213 = por %p211, %p212
      %p215 = scmp.ne.s32.totalorder %s198, %s214
      %p216 = scmp.eq.s32.totalorder %s28, 0
      %p217 = por %p215, %p216
      %p218 = scmp.le.s32.totalorder 1, %s22
      %p219 = scmp.lt.s32.totalorder %s22, 3
      %p220 = pnand %p218, %p219
      %p221 = pneg %p220
      // Predicated region
      $region9: #{tpu_custom_call.1} parent=5 // pred_check
        _
      $region10: #{tpu_custom_call.1} parent=5 // pred_check_branch
        %223 = sbr.rel (%p220) target = $region12
      $region11: #{tpu_custom_call.1} parent=5 // pred_region
        %s224 = ssub.s32 %s22, 1
        // Predicated region
        $region13: #{tpu_custom_call.1} parent=11 // pred_check
          %p225 = pneg %p69
        $region14: #{tpu_custom_call.1} parent=11 // pred_check_branch
          %227 = sbr.rel (%p225) target = $region16
        $region15: #{tpu_custom_call.1} parent=11 // pred_region
          %s229 = ssub.s32 4096, 4096
          %230 = vsyncadd [#allocation7], %s229
          %s231 = sshll.u32 [#allocation6], 4
          %s232 = int_to_ptr.vmem [resolvable:$true] %s231
          %237 = dma.hbm_to_vmem [thread:$0]  %s1, 4096, %s232, [#allocation7], 128, 128, 8
        $region16: #{tpu_custom_call.1} parent=11 // pred_fallthru
          _
        // Predicated region
        $region17: #{tpu_custom_call.1} parent=11 // pred_check
          %p238 = pneg %p90
        $region18: #{tpu_custom_call.1} parent=11 // pred_check_branch
          %240 = sbr.rel (%p238) target = $region20
        $region19: #{tpu_custom_call.1} parent=11 // pred_region
          _
        $region20: #{tpu_custom_call.1} parent=11 // pred_fallthru
          _
        // Predicated region
        $region21: #{tpu_custom_call.1} parent=11 // pred_check
          %p241 = pneg %p111
        $region22: #{tpu_custom_call.1} parent=11 // pred_check_branch
          %243 = sbr.rel (%p241) target = $region24
        $region23: #{tpu_custom_call.1} parent=11 // pred_region
          _
        $region24: #{tpu_custom_call.1} parent=11 // pred_fallthru
          _
        // Predicated region
        $region25: #{tpu_custom_call.1} parent=11 // pred_check
          %p244 = pneg %p132
        $region26: #{tpu_custom_call.1} parent=11 // pred_check_branch
          %246 = sbr.rel (%p244) target = $region28
        $region27: #{tpu_custom_call.1} parent=11 // pred_region
          _
        $region28: #{tpu_custom_call.1} parent=11 // pred_fallthru
          _
      $region12: #{tpu_custom_call.1} parent=5 // pred_fallthru
        _
      %p247 = scmp.lt.s32.totalorder %s22, 2
      // Predicated region
      $region29: #{tpu_custom_call.1} parent=5 // pred_check
        %p248 = pneg %p247
      $region30: #{tpu_custom_call.1} parent=5 // pred_check_branch
        %250 = sbr.rel (%p248) target = $region32
      $region31: #{tpu_custom_call.1} parent=5 // pred_region
        // Predicated region
        $region33: #{tpu_custom_call.1} parent=31 // pred_check
          %p251 = pneg %p42
        $region34: #{tpu_custom_call.1} parent=31 // pred_check_branch
          %253 = sbr.rel (%p251) target = $region36
        $region35: #{tpu_custom_call.1} parent=31 // pred_region
          %s254 = sand.u32 %s32, 1
          %s255 = scalar_lea.sflag [#allocation4], %s254
          %s256 = sand.u32 %s32, 1
          %s257 = smul.addr %s256, 256
          %s258 = scalar_lea.vmem [#allocation3], %s257
          %s259 = smul.u32 32, %s22
          %s260 = ssub.s32 63, %s259
          %p261 = scmp.lt.s32.totalorder %s260, 32
          %s262 = scalar_select %p261, %s260, 32
          %s263 = smul.u32 64, %s262
          %s264 = smul.u32 %s263, 2
          %s266 = ssub.s32 4096, %s264
          %267 = vsyncadd %s255, %s266
          %p268 = scmp.ne.s32.totalorder 0, %s264
          %s269 = smul.addr %s259, 2
          %s270 = smul.addr %s269, 64
          %s271 = scalar_lea.hbm %s0, %s270
          %s272 = smul.u32 8, %s262
          %s273 = sshll.u32 %s258, 4
          %s274 = int_to_ptr.vmem [resolvable:$true] %s273
          %s275 = sshll.u32 %s272, 4
          %279 = dma.hbm_to_vmem [thread:$0]  (%p268), %s271, %s275, %s274, %s255, 128, 128, 8
        $region36: #{tpu_custom_call.1} parent=31 // pred_fallthru
          _
      $region32: #{tpu_custom_call.1} parent=5 // pred_fallthru
        _
      %p280 = scmp.le.s32.totalorder 1, %s22
      %p281 = scmp.lt.s32.totalorder %s22, 3
      %p282 = pnand %p280, %p281
      %p283 = pneg %p282
      // Predicated region
      $region37: #{tpu_custom_call.1} parent=5 // pred_check
        _
      $region38: #{tpu_custom_call.1} parent=5 // pred_check_branch
        %285 = sbr.rel (%p282) target = $region40
      $region39: #{tpu_custom_call.1} parent=5 // pred_region
        %s286 = ssub.s32 %s22, 1
        %s287 = sand.u32 %s35, 1
        %s288 = scalar_lea.sflag [#allocation4], %s287
        %s289 = sand.u32 %s35, 1
        %s290 = smul.addr %s289, 256
        %s291 = scalar_lea.vmem [#allocation3], %s290
        // Predicated region
        $region41: #{tpu_custom_call.1} parent=39 // pred_check
          %p292 = pneg %p48
        $region42: #{tpu_custom_call.1} parent=39 // pred_check_branch
          %294 = sbr.rel (%p292) target = $region44
        $region43: #{tpu_custom_call.1} parent=39 // pred_region
          %295 = dma.done %s288, 4096
        $region44: #{tpu_custom_call.1} parent=39 // pred_fallthru
          _
        // Predicated region
        $region45: #{tpu_custom_call.1} parent=39 // pred_check
          %p296 = pneg %p69
        $region46: #{tpu_custom_call.1} parent=39 // pred_check_branch
          %298 = sbr.rel (%p296) target = $region48
        $region47: #{tpu_custom_call.1} parent=39 // pred_region
          %299 = dma.done [#allocation7], 4096
        $region48: #{tpu_custom_call.1} parent=39 // pred_fallthru
          _
        %s300 = sand.u32 %s35, 1
        %s301 = scalar_lea.sflag [#allocation4], %s300
        %s302 = sand.u32 %s35, 1
        %s303 = smul.addr %s302, 256
        %s304 = scalar_lea.vmem [#allocation3], %s303
        %p305 = pneg %p48
        %p306 = pneg %p45
        %p307 = pneg %p69
        %p308 = pneg %p66
        %p309 = pneg %p90
        %p310 = pneg %p87
        %p311 = pneg %p111
        %p312 = pneg %p108
        %p313 = pneg %p132
        %p314 = pneg %p129
        %p315 = pneg %p158
        %p316 = pneg %p155
        %s317 = sand.u32 %s145, 1
        %s318 = scalar_lea.sflag [#allocation5], %s317
        %s319 = sand.u32 %s145, 1
        %s320 = smul.addr %s319, 512
        %s321 = scalar_lea.vmem [#allocation8], %s320
        %p322 = pneg %p184
        %p323 = pneg %p181
        %s324 = sand.u32 %s171, 1
        %s325 = sand.u32 %s171, 1
        %s326 = smul.addr %s325, 256
        %s327 = scalar_lea.vmem [#allocation9], %s326
        %p328 = pneg %p210
        %p329 = pneg %p207
        %s330 = sand.u32 %s197, 1
        %s331 = sand.u32 %s197, 1
        %s332 = smul.addr %s331, 256
        %s333 = scalar_lea.vmem [#allocation10], %s332
        %s334 = smul.u32 32, %s27
        %s335 = ssub.s32 63, %s334
        %p336 = scmp.lt.s32.totalorder %s335, 32
        %s337 = scalar_select %p336, %s335, 32
        %s338 = smul.u32 64, %s337
        %s339 = smul.u32 %s338, 2
        %s340 = smul.u32 32, %s27
        %s341 = ssub.s32 63, %s340
        %p342 = scmp.lt.s32.totalorder %s341, 32
        %s343 = scalar_select %p342, %s341, 32
        %s344 = smul.u32 128, %s343
        %s345 = smul.u32 %s344, 2
        %s346 = smul.u32 32, %s27
        %s347 = ssub.s32 63, %s346
        %p348 = scmp.lt.s32.totalorder %s347, 32
        %s349 = scalar_select %p348, %s347, 32
        %s350 = smul.u32 128, %s349
        %s351 = smul.u32 32, %s27
        %s352 = ssub.s32 63, %s351
        %p353 = scmp.lt.s32.totalorder %s352, 32
        %s354 = scalar_select %p353, %s352, 32
        %s355 = smul.u32 128, %s354
        %v356 = vld [vmem:[%s291] sm:$0xff]
        %v357 = vld [vmem:[%s291 + $0x8] sm:$0xff]
        %v358 = vld [vmem:[%s291 + $0x10] sm:$0xff]
        %v359 = vld [vmem:[%s291 + $0x18] sm:$0xff]
        %v360 = vld [vmem:[%s291 + $0x20] sm:$0xff]
        %v361 = vld [vmem:[%s291 + $0x28] sm:$0xff]
        %v362 = vld [vmem:[%s291 + $0x30] sm:$0xff]
        %v363 = vld [vmem:[%s291 + $0x38] sm:$0xff]
        %v364 = vld [vmem:[%s291 + $0x40] sm:$0xff]
        %v365 = vld [vmem:[%s291 + $0x48] sm:$0xff]
        %v366 = vld [vmem:[%s291 + $0x50] sm:$0xff]
        %v367 = vld [vmem:[%s291 + $0x58] sm:$0xff]
        %v368 = vld [vmem:[%s291 + $0x60] sm:$0xff]
        %v369 = vld [vmem:[%s291 + $0x68] sm:$0xff]
        %v370 = vld [vmem:[%s291 + $0x70] sm:$0xff]
        %v371 = vld [vmem:[%s291 + $0x78] sm:$0xff]
        %v372 = vld [vmem:[%s291 + $0x80] sm:$0xff]
        %v373 = vld [vmem:[%s291 + $0x88] sm:$0xff]
        %v374 = vld [vmem:[%s291 + $0x90] sm:$0xff]
        %v375 = vld [vmem:[%s291 + $0x98] sm:$0xff]
        %v376 = vld [vmem:[%s291 + $0xa0] sm:$0xff]
        %v377 = vld [vmem:[%s291 + $0xa8] sm:$0xff]
        %v378 = vld [vmem:[%s291 + $0xb0] sm:$0xff]
        %v379 = vld [vmem:[%s291 + $0xb8] sm:$0xff]
        %v380 = vld [vmem:[%s291 + $0xc0] sm:$0xff]
        %v381 = vld [vmem:[%s291 + $0xc8] sm:$0xff]
        %v382 = vld [vmem:[%s291 + $0xd0] sm:$0xff]
        %v383 = vld [vmem:[%s291 + $0xd8] sm:$0xff]
        %v384 = vld [vmem:[%s291 + $0xe0] sm:$0xff]
        %v385 = vld [vmem:[%s291 + $0xe8] sm:$0xff]
        %v386 = vld [vmem:[%s291 + $0xf0] sm:$0xff]
        %v387 = vld [vmem:[%s291 + $0xf8] sm:$0xff]
        %v388 = vld [vmem:[#allocation6] sm:$0xff]
        %v389 = vld [vmem:[#allocation6 + $0x8] sm:$0xff]
        %v390 = vld [vmem:[#allocation6 + $0x10] sm:$0xff]
        %v391 = vld [vmem:[#allocation6 + $0x18] sm:$0xff]
        %v392 = vld [vmem:[#allocation6 + $0x20] sm:$0xff]
        %v393 = vld [vmem:[#allocation6 + $0x28] sm:$0xff]
        %v394 = vld [vmem:[#allocation6 + $0x30] sm:$0xff]
        %v395 = vld [vmem:[#allocation6 + $0x38] sm:$0xff]
        %v396 = vld [vmem:[#allocation6 + $0x40] sm:$0xff]
        %v397 = vld [vmem:[#allocation6 + $0x48] sm:$0xff]
        %v398 = vld [vmem:[#allocation6 + $0x50] sm:$0xff]
        %v399 = vld [vmem:[#allocation6 + $0x58] sm:$0xff]
        %v400 = vld [vmem:[#allocation6 + $0x60] sm:$0xff]
        %v401 = vld [vmem:[#allocation6 + $0x68] sm:$0xff]
        %v402 = vld [vmem:[#allocation6 + $0x70] sm:$0xff]
        %v403 = vld [vmem:[#allocation6 + $0x78] sm:$0xff]
        %v404 = vld [vmem:[#allocation6 + $0x80] sm:$0xff]
        %v405 = vld [vmem:[#allocation6 + $0x88] sm:$0xff]
        %v406 = vld [vmem:[#allocation6 + $0x90] sm:$0xff]
        %v407 = vld [vmem:[#allocation6 + $0x98] sm:$0xff]
        %v408 = vld [vmem:[#allocation6 + $0xa0] sm:$0xff]
        %v409 = vld [vmem:[#allocation6 + $0xa8] sm:$0xff]
        %v410 = vld [vmem:[#allocation6 + $0xb0] sm:$0xff]
        %v411 = vld [vmem:[#allocation6 + $0xb8] sm:$0xff]
        %v412 = vld [vmem:[#allocation6 + $0xc0] sm:$0xff]
        %v413 = vld [vmem:[#allocation6 + $0xc8] sm:$0xff]
        %v414 = vld [vmem:[#allocation6 + $0xd0] sm:$0xff]
        %v415 = vld [vmem:[#allocation6 + $0xd8] sm:$0xff]
        %v416 = vld [vmem:[#allocation6 + $0xe0] sm:$0xff]
        %v417 = vld [vmem:[#allocation6 + $0xe8] sm:$0xff]
        %v418 = vld [vmem:[#allocation6 + $0xf0] sm:$0xff]
        %v419 = vld [vmem:[#allocation6 + $0xf8] sm:$0xff]
        %v420 = vld [vmem:[%s2] sm:$0x3]
        %v422 = vlaneseq
        %v423 = vshrl.u32 %v422, 7
        %v424 = vsub.s32 0, %v423
        %v425 = vrot.slane %v420, %v424
        %v426 = vlaneseq
        %v427 = vshrl.u32 %v426, 7
        %v428 = vsub.s32 1, %v427
        %v429 = vrot.slane %v420, %v428
        %v464 = vunpack.c.l.b16 %v356
        %v465 = vunpack.c.h.b16 %v356
        %v466 = vunpack.c.l.b16 %v357
        %v467 = vunpack.c.h.b16 %v357
        %v468 = vunpack.c.l.b16 %v358
        %v469 = vunpack.c.h.b16 %v358
        %v470 = vunpack.c.l.b16 %v359
        %v471 = vunpack.c.h.b16 %v359
        %v472 = vunpack.c.l.b16 %v360
        %v473 = vunpack.c.h.b16 %v360
        %v474 = vunpack.c.l.b16 %v361
        %v475 = vunpack.c.h.b16 %v361
        %v476 = vunpack.c.l.b16 %v362
        %v477 = vunpack.c.h.b16 %v362
        %v478 = vunpack.c.l.b16 %v363
        %v479 = vunpack.c.h.b16 %v363
        %v480 = vunpack.c.l.b16 %v364
        %v481 = vunpack.c.h.b16 %v364
        %v482 = vunpack.c.l.b16 %v365
        %v483 = vunpack.c.h.b16 %v365
        %v484 = vunpack.c.l.b16 %v366
        %v485 = vunpack.c.h.b16 %v366
        %v486 = vunpack.c.l.b16 %v367
        %v487 = vunpack.c.h.b16 %v367
        %v488 = vunpack.c.l.b16 %v368
        %v489 = vunpack.c.h.b16 %v368
        %v490 = vunpack.c.l.b16 %v369
        %v491 = vunpack.c.h.b16 %v369
        %v492 = vunpack.c.l.b16 %v370
        %v493 = vunpack.c.h.b16 %v370
        %v494 = vunpack.c.l.b16 %v371
        %v495 = vunpack.c.h.b16 %v371
        %v496 = vunpack.c.l.b16 %v372
        %v497 = vunpack.c.h.b16 %v372
        %v498 = vunpack.c.l.b16 %v373
        %v499 = vunpack.c.h.b16 %v373
        %v500 = vunpack.c.l.b16 %v374
        %v501 = vunpack.c.h.b16 %v374
        %v502 = vunpack.c.l.b16 %v375
        %v503 = vunpack.c.h.b16 %v375
        %v504 = vunpack.c.l.b16 %v376
        %v505 = vunpack.c.h.b16 %v376
        %v506 = vunpack.c.l.b16 %v377
        %v507 = vunpack.c.h.b16 %v377
        %v508 = vunpack.c.l.b16 %v378
        %v509 = vunpack.c.h.b16 %v378
        %v510 = vunpack.c.l.b16 %v379
        %v511 = vunpack.c.h.b16 %v379
        %v512 = vunpack.c.l.b16 %v380
        %v513 = vunpack.c.h.b16 %v380
        %v514 = vunpack.c.l.b16 %v381
        %v515 = vunpack.c.h.b16 %v381
        %v516 = vunpack.c.l.b16 %v382
        %v517 = vunpack.c.h.b16 %v382
        %v518 = vunpack.c.l.b16 %v383
        %v519 = vunpack.c.h.b16 %v383
        %v520 = vunpack.c.l.b16 %v384
        %v521 = vunpack.c.h.b16 %v384
        %v522 = vunpack.c.l.b16 %v385
        %v523 = vunpack.c.h.b16 %v385
        %v524 = vunpack.c.l.b16 %v386
        %v525 = vunpack.c.h.b16 %v386
        %v526 = vunpack.c.l.b16 %v387
        %v527 = vunpack.c.h.b16 %v387
        %v528 = vpack.c.b16 %v466, %v464
        %v529 = vpack.c.b16 %v467, %v465
        %v530 = vpack.c.b16 %v470, %v468
        %v531 = vpack.c.b16 %v471, %v469
        %v532 = vpack.c.b16 %v474, %v472
        %v533 = vpack.c.b16 %v475, %v473
        %v534 = vpack.c.b16 %v478, %v476
        %v535 = vpack.c.b16 %v479, %v477
        %v536 = vpack.c.b16 %v482, %v480
        %v537 = vpack.c.b16 %v483, %v481
        %v538 = vpack.c.b16 %v486, %v484
        %v539 = vpack.c.b16 %v487, %v485
        %v540 = vpack.c.b16 %v490, %v488
        %v541 = vpack.c.b16 %v491, %v489
        %v542 = vpack.c.b16 %v494, %v492
        %v543 = vpack.c.b16 %v495, %v493
        %v544 = vpack.c.b16 %v498, %v496
        %v545 = vpack.c.b16 %v499, %v497
        %v546 = vpack.c.b16 %v502, %v500
        %v547 = vpack.c.b16 %v503, %v501
        %v548 = vpack.c.b16 %v506, %v504
        %v549 = vpack.c.b16 %v507, %v505
        %v550 = vpack.c.b16 %v510, %v508
        %v551 = vpack.c.b16 %v511, %v509
        %v552 = vpack.c.b16 %v514, %v512
        %v553 = vpack.c.b16 %v515, %v513
        %v554 = vpack.c.b16 %v518, %v516
        %v555 = vpack.c.b16 %v519, %v517
        %v556 = vpack.c.b16 %v522, %v520
        %v557 = vpack.c.b16 %v523, %v521
        %v558 = vpack.c.b16 %v526, %v524
        %v559 = vpack.c.b16 %v527, %v525
        %v624 = vunpack.c.l.b16 %v388
        %v625 = vunpack.c.h.b16 %v388
        %v626 = vunpack.c.l.b16 %v389
        %v627 = vunpack.c.h.b16 %v389
        %v628 = vunpack.c.l.b16 %v390
        %v629 = vunpack.c.h.b16 %v390
        %v630 = vunpack.c.l.b16 %v391
        %v631 = vunpack.c.h.b16 %v391
        %v632 = vunpack.c.l.b16 %v392
        %v633 = vunpack.c.h.b16 %v392
        %v634 = vunpack.c.l.b16 %v393
        %v635 = vunpack.c.h.b16 %v393
        %v636 = vunpack.c.l.b16 %v394
        %v637 = vunpack.c.h.b16 %v394
        %v638 = vunpack.c.l.b16 %v395
        %v639 = vunpack.c.h.b16 %v395
        %v640 = vunpack.c.l.b16 %v396
        %v641 = vunpack.c.h.b16 %v396
        %v642 = vunpack.c.l.b16 %v397
        %v643 = vunpack.c.h.b16 %v397
        %v644 = vunpack.c.l.b16 %v398
        %v645 = vunpack.c.h.b16 %v398
        %v646 = vunpack.c.l.b16 %v399
        %v647 = vunpack.c.h.b16 %v399
        %v648 = vunpack.c.l.b16 %v400
        %v649 = vunpack.c.h.b16 %v400
        %v650 = vunpack.c.l.b16 %v401
        %v651 = vunpack.c.h.b16 %v401
        %v652 = vunpack.c.l.b16 %v402
        %v653 = vunpack.c.h.b16 %v402
        %v654 = vunpack.c.l.b16 %v403
        %v655 = vunpack.c.h.b16 %v403
        %v656 = vunpack.c.l.b16 %v404
        %v657 = vunpack.c.h.b16 %v404
        %v658 = vunpack.c.l.b16 %v405
        %v659 = vunpack.c.h.b16 %v405
        %v660 = vunpack.c.l.b16 %v406
        %v661 = vunpack.c.h.b16 %v406
        %v662 = vunpack.c.l.b16 %v407
        %v663 = vunpack.c.h.b16 %v407
        %v664 = vunpack.c.l.b16 %v408
        %v665 = vunpack.c.h.b16 %v408
        %v666 = vunpack.c.l.b16 %v409
        %v667 = vunpack.c.h.b16 %v409
        %v668 = vunpack.c.l.b16 %v410
        %v669 = vunpack.c.h.b16 %v410
        %v670 = vunpack.c.l.b16 %v411
        %v671 = vunpack.c.h.b16 %v411
        %v672 = vunpack.c.l.b16 %v412
        %v673 = vunpack.c.h.b16 %v412
        %v674 = vunpack.c.l.b16 %v413
        %v675 = vunpack.c.h.b16 %v413
        %v676 = vunpack.c.l.b16 %v414
        %v677 = vunpack.c.h.b16 %v414
        %v678 = vunpack.c.l.b16 %v415
        %v679 = vunpack.c.h.b16 %v415
        %v680 = vunpack.c.l.b16 %v416
        %v681 = vunpack.c.h.b16 %v416
        %v682 = vunpack.c.l.b16 %v417
        %v683 = vunpack.c.h.b16 %v417
        %v684 = vunpack.c.l.b16 %v418
        %v685 = vunpack.c.h.b16 %v418
        %v686 = vunpack.c.l.b16 %v419
        %v687 = vunpack.c.h.b16 %v419
        %v688 = vpack.c.b16 %v626, %v624
        %v689 = vpack.c.b16 %v627, %v625
        %v690 = vpack.c.b16 %v630, %v628
        %v691 = vpack.c.b16 %v631, %v629
        %v692 = vpack.c.b16 %v634, %v632
        %v693 = vpack.c.b16 %v635, %v633
        %v694 = vpack.c.b16 %v638, %v636
        %v695 = vpack.c.b16 %v639, %v637
        %v696 = vpack.c.b16 %v642, %v640
        %v697 = vpack.c.b16 %v643, %v641
        %v698 = vpack.c.b16 %v646, %v644
        %v699 = vpack.c.b16 %v647, %v645
        %v700 = vpack.c.b16 %v650, %v648
        %v701 = vpack.c.b16 %v651, %v649
        %v702 = vpack.c.b16 %v654, %v652
        %v703 = vpack.c.b16 %v655, %v653
        %v704 = vpack.c.b16 %v658, %v656
        %v705 = vpack.c.b16 %v659, %v657
        %v706 = vpack.c.b16 %v662, %v660
        %v707 = vpack.c.b16 %v663, %v661
        %v708 = vpack.c.b16 %v666, %v664
        %v709 = vpack.c.b16 %v667, %v665
        %v710 = vpack.c.b16 %v670, %v668
        %v711 = vpack.c.b16 %v671, %v669
        %v712 = vpack.c.b16 %v674, %v672
        %v713 = vpack.c.b16 %v675, %v673
        %v714 = vpack.c.b16 %v678, %v676
        %v715 = vpack.c.b16 %v679, %v677
        %v716 = vpack.c.b16 %v682, %v680
        %v717 = vpack.c.b16 %v683, %v681
        %v718 = vpack.c.b16 %v686, %v684
        %v719 = vpack.c.b16 %v687, %v685
        %752 = vmatprep.subr.bf16.mxu0 %v689
        %753 = vmatpush1.bf16.msra.mxu0 %v688
        %754 = vmatprep.subr.bf16.mxu0 %v691
        %755 = vmatpush1.bf16.msra.mxu0 %v690
        %756 = vmatprep.subr.bf16.mxu0 %v693
        %757 = vmatpush1.bf16.msra.mxu0 %v692
        %758 = vmatprep.subr.bf16.mxu0 %v695
        %759 = vmatpush1.bf16.msra.mxu0 %v694
        %760 = vmatprep.subr.bf16.mxu0 %v697
        %761 = vmatpush1.bf16.msra.mxu0 %v696
        %762 = vmatprep.subr.bf16.mxu0 %v699
        %763 = vmatpush1.bf16.msra.mxu0 %v698
        %764 = vmatprep.subr.bf16.mxu0 %v701
        %765 = vmatpush1.bf16.msra.mxu0 %v700
        %766 = vmatprep.subr.bf16.mxu0 %v703
        %767 = vmatpush1.bf16.msra.mxu0 %v702
        %768 = vmatprep.subr.bf16.mxu0 %v705
        %769 = vmatpush1.bf16.msra.mxu0 %v704
        %770 = vmatprep.subr.bf16.mxu0 %v707
        %771 = vmatpush1.bf16.msra.mxu0 %v706
        %772 = vmatprep.subr.bf16.mxu0 %v709
        %773 = vmatpush1.bf16.msra.mxu0 %v708
        %774 = vmatprep.subr.bf16.mxu0 %v711
        %775 = vmatpush1.bf16.msra.mxu0 %v710
        %776 = vmatprep.subr.bf16.mxu0 %v713
        %777 = vmatpush1.bf16.msra.mxu0 %v712
        %778 = vmatprep.subr.bf16.mxu0 %v715
        %779 = vmatpush1.bf16.msra.mxu0 %v714
        %780 = vmatprep.subr.bf16.mxu0 %v717
        %781 = vmatpush1.bf16.msra.mxu0 %v716
        %782 = vmatprep.subr.bf16.mxu0 %v719
        %783 = vmatpush1.bf16.msra.mxu0 %v718
        %784 = vmatprep.mubr.bf16.mxu0 %v529
        %785 = vmatmul.mubr.bf16.gmra.mrb[0].mxu0 %v528
        %v786 = vpop.f32.mrb[0].mxu0
        %v787 = vadd.f32 %v425, %v786
        %v788 = vpop.f32.mrb[0].mxu0
        %v789 = vadd.f32 %v429, %v788
        %v790 = vpop.f32.mrb[0].mxu0
        %v791 = vadd.f32 %v425, %v790
        %v792 = vpop.f32.mrb[0].mxu0
        %v793 = vadd.f32 %v429, %v792
        %794 = vmatprep.mubr.bf16.mxu0 %v531
        %795 = vmatmul.mubr.bf16.gmra.mrb[0].mxu0 %v530
        %v796 = vpop.f32.mrb[0].mxu0
        %v797 = vadd.f32 %v425, %v796
        %v798 = vpop.f32.mrb[0].mxu0
        %v799 = vadd.f32 %v429, %v798
        %v800 = vpop.f32.mrb[0].mxu0
        %v801 = vadd.f32 %v425, %v800
        %v802 = vpop.f32.mrb[0].mxu0
        %v803 = vadd.f32 %v429, %v802
        %804 = vmatprep.mubr.bf16.mxu0 %v533
        %805 = vmatmul.mubr.bf16.gmra.mrb[0].mxu0 %v532
        %v806 = vpop.f32.mrb[0].mxu0
        %v807 = vadd.f32 %v425, %v806
        %v808 = vpop.f32.mrb[0].mxu0
        %v809 = vadd.f32 %v429, %v808
        %v810 = vpop.f32.mrb[0].mxu0
        %v811 = vadd.f32 %v425, %v810
        %v812 = vpop.f32.mrb[0].mxu0
        %v813 = vadd.f32 %v429, %v812
        %814 = vmatprep.mubr.bf16.mxu0 %v535
        %815 = vmatmul.mubr.bf16.gmra.mrb[0].mxu0 %v534
        %v816 = vpop.f32.mrb[0].mxu0
        %v817 = vadd.f32 %v425, %v816
        %v818 = vpop.f32.mrb[0].mxu0
        %v819 = vadd.f32 %v429, %v818
        %v820 = vpop.f32.mrb[0].mxu0
        %v821 = vadd.f32 %v425, %v820
        %v822 = vpop.f32.mrb[0].mxu0
        %v823 = vadd.f32 %v429, %v822
        %824 = vmatprep.mubr.bf16.mxu0 %v537
        %825 = vmatmul.mubr.bf16.gmra.mrb[0].mxu0 %v536
        %v826 = vpop.f32.mrb[0].mxu0
        %v827 = vadd.f32 %v425, %v826
        %v828 = vpop.f32.mrb[0].mxu0
        %v829 = vadd.f32 %v429, %v828
        %v830 = vpop.f32.mrb[0].mxu0
        %v831 = vadd.f32 %v425, %v830
        %v832 = vpop.f32.mrb[0].mxu0
        %v833 = vadd.f32 %v429, %v832
        %834 = vmatprep.mubr.bf16.mxu0 %v539
        %835 = vmatmul.mubr.bf16.gmra.mrb[0].mxu0 %v538
        %v836 = vpop.f32.mrb[0].mxu0
        %v837 = vadd.f32 %v425, %v836
        %v838 = vpop.f32.mrb[0].mxu0
        %v839 = vadd.f32 %v429, %v838
        %v840 = vpop.f32.mrb[0].mxu0
        %v841 = vadd.f32 %v425, %v840
        %v842 = vpop.f32.mrb[0].mxu0
        %v843 = vadd.f32 %v429, %v842
        %844 = vmatprep.mubr.bf16.mxu0 %v541
        %845 = vmatmul.mubr.bf16.gmra.mrb[0].mxu0 %v540
        %v846 = vpop.f32.mrb[0].mxu0
        %v847 = vadd.f32 %v425, %v846
        %v848 = vpop.f32.mrb[0].mxu0
        %v849 = vadd.f32 %v429, %v848
        %v850 = vpop.f32.mrb[0].mxu0
        %v851 = vadd.f32 %v425, %v850
        %v852 = vpop.f32.mrb[0].mxu0
        %v853 = vadd.f32 %v429, %v852
        %854 = vmatprep.mubr.bf16.mxu0 %v543
        %855 = vmatmul.mubr.bf16.gmra.mrb[0].mxu0 %v542
        %v856 = vpop.f32.mrb[0].mxu0
        %v857 = vadd.f32 %v425, %v856
        %v858 = vpop.f32.mrb[0].mxu0
        %v859 = vadd.f32 %v429, %v858
        %v860 = vpop.f32.mrb[0].mxu0
        %v861 = vadd.f32 %v425, %v860
        %v862 = vpop.f32.mrb[0].mxu0
        %v863 = vadd.f32 %v429, %v862
        %864 = vmatprep.mubr.bf16.mxu0 %v545
        %865 = vmatmul.mubr.bf16.gmra.mrb[0].mxu0 %v544
        %v866 = vpop.f32.mrb[0].mxu0
        %v867 = vadd.f32 %v425, %v866
        %v868 = vpop.f32.mrb[0].mxu0
        %v869 = vadd.f32 %v429, %v868
        %v870 = vpop.f32.mrb[0].mxu0
        %v871 = vadd.f32 %v425, %v870
        %v872 = vpop.f32.mrb[0].mxu0
        %v873 = vadd.f32 %v429, %v872
        %874 = vmatprep.mubr.bf16.mxu0 %v547
        %875 = vmatmul.mubr.bf16.gmra.mrb[0].mxu0 %v546
        %v876 = vpop.f32.mrb[0].mxu0
        %v877 = vadd.f32 %v425, %v876
        %v878 = vpop.f32.mrb[0].mxu0
        %v879 = vadd.f32 %v429, %v878
        %v880 = vpop.f32.mrb[0].mxu0
        %v881 = vadd.f32 %v425, %v880
        %v882 = vpop.f32.mrb[0].mxu0
        %v883 = vadd.f32 %v429, %v882
        %884 = vmatprep.mubr.bf16.mxu0 %v549
        %885 = vmatmul.mubr.bf16.gmra.mrb[0].mxu0 %v548
        %v886 = vpop.f32.mrb[0].mxu0
        %v887 = vadd.f32 %v425, %v886
        %v888 = vpop.f32.mrb[0].mxu0
        %v889 = vadd.f32 %v429, %v888
        %v890 = vpop.f32.mrb[0].mxu0
        %v891 = vadd.f32 %v425, %v890
        %v892 = vpop.f32.mrb[0].mxu0
        %v893 = vadd.f32 %v429, %v892
        %894 = vmatprep.mubr.bf16.mxu0 %v551
        %895 = vmatmul.mubr.bf16.gmra.mrb[0].mxu0 %v550
        %v896 = vpop.f32.mrb[0].mxu0
        %v897 = vadd.f32 %v425, %v896
        %v898 = vpop.f32.mrb[0].mxu0
        %v899 = vadd.f32 %v429, %v898
        %v900 = vpop.f32.mrb[0].mxu0
        %v901 = vadd.f32 %v425, %v900
        %v902 = vpop.f32.mrb[0].mxu0
        %v903 = vadd.f32 %v429, %v902
        %904 = vmatprep.mubr.bf16.mxu0 %v553
        %905 = vmatmul.mubr.bf16.gmra.mrb[0].mxu0 %v552
        %v906 = vpop.f32.mrb[0].mxu0
        %v907 = vadd.f32 %v425, %v906
        %v908 = vpop.f32.mrb[0].mxu0
        %v909 = vadd.f32 %v429, %v908
        %v910 = vpop.f32.mrb[0].mxu0
        %v911 = vadd.f32 %v425, %v910
        %v912 = vpop.f32.mrb[0].mxu0
        %v913 = vadd.f32 %v429, %v912
        %914 = vmatprep.mubr.bf16.mxu0 %v555
        %915 = vmatmul.mubr.bf16.gmra.mrb[0].mxu0 %v554
        %v916 = vpop.f32.mrb[0].mxu0
        %v917 = vadd.f32 %v425, %v916
        %v918 = vpop.f32.mrb[0].mxu0
        %v919 = vadd.f32 %v429, %v918
        %v920 = vpop.f32.mrb[0].mxu0
        %v921 = vadd.f32 %v425, %v920
        %v922 = vpop.f32.mrb[0].mxu0
        %v923 = vadd.f32 %v429, %v922
        %924 = vmatprep.mubr.bf16.mxu0 %v557
        %925 = vmatmul.mubr.bf16.gmra.mrb[0].mxu0 %v556
        %v926 = vpop.f32.mrb[0].mxu0
        %v927 = vadd.f32 %v425, %v926
        %v928 = vpop.f32.mrb[0].mxu0
        %v929 = vadd.f32 %v429, %v928
        %v930 = vpop.f32.mrb[0].mxu0
        %v931 = vadd.f32 %v425, %v930
        %v932 = vpop.f32.mrb[0].mxu0
        %v933 = vadd.f32 %v429, %v932
        %934 = vmatprep.mubr.bf16.mxu0 %v559
        %935 = vmatmul.mubr.bf16.gmra.mrb[0].mxu0 %v558
        %v936 = vpop.f32.mrb[0].mxu0
        %v937 = vadd.f32 %v425, %v936
        %v938 = vpop.f32.mrb[0].mxu0
        %v939 = vadd.f32 %v429, %v938
        %v940 = vpop.f32.mrb[0].mxu0
        %v941 = vadd.f32 %v425, %v940
        %v942 = vpop.f32.mrb[0].mxu0
        %v943 = vadd.f32 %v429, %v942
        %944 = vdwg.mxu0
        %vm945 = vcmp.gt.f32.partialorder %v787, 0.0
        %vm946 = vcmp.gt.f32.partialorder %v789, 0.0
        %vm947 = vcmp.gt.f32.partialorder %v791, 0.0
        %vm948 = vcmp.gt.f32.partialorder %v793, 0.0
        %vm949 = vcmp.gt.f32.partialorder %v797, 0.0
        %vm950 = vcmp.gt.f32.partialorder %v799, 0.0
        %vm951 = vcmp.gt.f32.partialorder %v801, 0.0
        %vm952 = vcmp.gt.f32.partialorder %v803, 0.0
        %vm953 = vcmp.gt.f32.partialorder %v807, 0.0
        %vm954 = vcmp.gt.f32.partialorder %v809, 0.0
        %vm955 = vcmp.gt.f32.partialorder %v811, 0.0
        %vm956 = vcmp.gt.f32.partialorder %v813, 0.0
        %vm957 = vcmp.gt.f32.partialorder %v817, 0.0
        %vm958 = vcmp.gt.f32.partialorder %v819, 0.0
        %vm959 = vcmp.gt.f32.partialorder %v821, 0.0
        %vm960 = vcmp.gt.f32.partialorder %v823, 0.0
        %vm961 = vcmp.gt.f32.partialorder %v827, 0.0
        %vm962 = vcmp.gt.f32.partialorder %v829, 0.0
        %vm963 = vcmp.gt.f32.partialorder %v831, 0.0
        %vm964 = vcmp.gt.f32.partialorder %v833, 0.0
        %vm965 = vcmp.gt.f32.partialorder %v837, 0.0
        %vm966 = vcmp.gt.f32.partialorder %v839, 0.0
        %vm967 = vcmp.gt.f32.partialorder %v841, 0.0
        %vm968 = vcmp.gt.f32.partialorder %v843, 0.0
        %vm969 = vcmp.gt.f32.partialorder %v847, 0.0
        %vm970 = vcmp.gt.f32.partialorder %v849, 0.0
        %vm971 = vcmp.gt.f32.partialorder %v851, 0.0
        %vm972 = vcmp.gt.f32.partialorder %v853, 0.0
        %vm973 = vcmp.gt.f32.partialorder %v857, 0.0
        %vm974 = vcmp.gt.f32.partialorder %v859, 0.0
        %vm975 = vcmp.gt.f32.partialorder %v861, 0.0
        %vm976 = vcmp.gt.f32.partialorder %v863, 0.0
        %vm977 = vcmp.gt.f32.partialorder %v867, 0.0
        %vm978 = vcmp.gt.f32.partialorder %v869, 0.0
        %vm979 = vcmp.gt.f32.partialorder %v871, 0.0
        %vm980 = vcmp.gt.f32.partialorder %v873, 0.0
        %vm981 = vcmp.gt.f32.partialorder %v877, 0.0
        %vm982 = vcmp.gt.f32.partialorder %v879, 0.0
        %vm983 = vcmp.gt.f32.partialorder %v881, 0.0
        %vm984 = vcmp.gt.f32.partialorder %v883, 0.0
        %vm985 = vcmp.gt.f32.partialorder %v887, 0.0
        %vm986 = vcmp.gt.f32.partialorder %v889, 0.0
        %vm987 = vcmp.gt.f32.partialorder %v891, 0.0
        %vm988 = vcmp.gt.f32.partialorder %v893, 0.0
        %vm989 = vcmp.gt.f32.partialorder %v897, 0.0
        %vm990 = vcmp.gt.f32.partialorder %v899, 0.0
        %vm991 = vcmp.gt.f32.partialorder %v901, 0.0
        %vm992 = vcmp.gt.f32.partialorder %v903, 0.0
        %vm993 = vcmp.gt.f32.partialorder %v907, 0.0
        %vm994 = vcmp.gt.f32.partialorder %v909, 0.0
        %vm995 = vcmp.gt.f32.partialorder %v911, 0.0
        %vm996 = vcmp.gt.f32.partialorder %v913, 0.0
        %vm997 = vcmp.gt.f32.partialorder %v917, 0.0
        %vm998 = vcmp.gt.f32.partialorder %v919, 0.0
        %vm999 = vcmp.gt.f32.partialorder %v921, 0.0
        %vm1000 = vcmp.gt.f32.partialorder %v923, 0.0
        %vm1001 = vcmp.gt.f32.partialorder %v927, 0.0
        %vm1002 = vcmp.gt.f32.partialorder %v929, 0.0
        %vm1003 = vcmp.gt.f32.partialorder %v931, 0.0
        %vm1004 = vcmp.gt.f32.partialorder %v933, 0.0
        %vm1005 = vcmp.gt.f32.partialorder %v937, 0.0
        %vm1006 = vcmp.gt.f32.partialorder %v939, 0.0
        %vm1007 = vcmp.gt.f32.partialorder %v941, 0.0
        %vm1008 = vcmp.gt.f32.partialorder %v943, 0.0
        %v1009 = vmul.f32 %v787, 0.2
        %v1010 = vmul.f32 %v789, 0.2
        %v1011 = vmul.f32 %v791, 0.2
        %v1012 = vmul.f32 %v793, 0.2
        %v1013 = vmul.f32 %v797, 0.2
        %v1014 = vmul.f32 %v799, 0.2
        %v1015 = vmul.f32 %v801, 0.2
        %v1016 = vmul.f32 %v803, 0.2
        %v1017 = vmul.f32 %v807, 0.2
        %v1018 = vmul.f32 %v809, 0.2
        %v1019 = vmul.f32 %v811, 0.2
        %v1020 = vmul.f32 %v813, 0.2
        %v1021 = vmul.f32 %v817, 0.2
        %v1022 = vmul.f32 %v819, 0.2
        %v1023 = vmul.f32 %v821, 0.2
        %v1024 = vmul.f32 %v823, 0.2
        %v1025 = vmul.f32 %v827, 0.2
        %v1026 = vmul.f32 %v829, 0.2
        %v1027 = vmul.f32 %v831, 0.2
        %v1028 = vmul.f32 %v833, 0.2
        %v1029 = vmul.f32 %v837, 0.2
        %v1030 = vmul.f32 %v839, 0.2
        %v1031 = vmul.f32 %v841, 0.2
        %v1032 = vmul.f32 %v843, 0.2
        %v1033 = vmul.f32 %v847, 0.2
        %v1034 = vmul.f32 %v849, 0.2
        %v1035 = vmul.f32 %v851, 0.2
        %v1036 = vmul.f32 %v853, 0.2
        %v1037 = vmul.f32 %v857, 0.2
        %v1038 = vmul.f32 %v859, 0.2
        %v1039 = vmul.f32 %v861, 0.2
        %v1040 = vmul.f32 %v863, 0.2
        %v1041 = vmul.f32 %v867, 0.2
        %v1042 = vmul.f32 %v869, 0.2
        %v1043 = vmul.f32 %v871, 0.2
        %v1044 = vmul.f32 %v873, 0.2
        %v1045 = vmul.f32 %v877, 0.2
        %v1046 = vmul.f32 %v879, 0.2
        %v1047 = vmul.f32 %v881, 0.2
        %v1048 = vmul.f32 %v883, 0.2
        %v1049 = vmul.f32 %v887, 0.2
        %v1050 = vmul.f32 %v889, 0.2
        %v1051 = vmul.f32 %v891, 0.2
        %v1052 = vmul.f32 %v893, 0.2
        %v1053 = vmul.f32 %v897, 0.2
        %v1054 = vmul.f32 %v899, 0.2
        %v1055 = vmul.f32 %v901, 0.2
        %v1056 = vmul.f32 %v903, 0.2
        %v1057 = vmul.f32 %v907, 0.2
        %v1058 = vmul.f32 %v909, 0.2
        %v1059 = vmul.f32 %v911, 0.2
        %v1060 = vmul.f32 %v913, 0.2
        %v1061 = vmul.f32 %v917, 0.2
        %v1062 = vmul.f32 %v919, 0.2
        %v1063 = vmul.f32 %v921, 0.2
        %v1064 = vmul.f32 %v923, 0.2
        %v1065 = vmul.f32 %v927, 0.2
        %v1066 = vmul.f32 %v929, 0.2
        %v1067 = vmul.f32 %v931, 0.2
        %v1068 = vmul.f32 %v933, 0.2
        %v1069 = vmul.f32 %v937, 0.2
        %v1070 = vmul.f32 %v939, 0.2
        %v1071 = vmul.f32 %v941, 0.2
        %v1072 = vmul.f32 %v943, 0.2
        %v1073 = vsel %vm945, %v787, %v1009
        %v1074 = vsel %vm946, %v789, %v1010
        %v1075 = vsel %vm947, %v791, %v1011
        %v1076 = vsel %vm948, %v793, %v1012
        %v1077 = vsel %vm949, %v797, %v1013
        %v1078 = vsel %vm950, %v799, %v1014
        %v1079 = vsel %vm951, %v801, %v1015
        %v1080 = vsel %vm952, %v803, %v1016
        %v1081 = vsel %vm953, %v807, %v1017
        %v1082 = vsel %vm954, %v809, %v1018
        %v1083 = vsel %vm955, %v811, %v1019
        %v1084 = vsel %vm956, %v813, %v1020
        %v1085 = vsel %vm957, %v817, %v1021
        %v1086 = vsel %vm958, %v819, %v1022
        %v1087 = vsel %vm959, %v821, %v1023
        %v1088 = vsel %vm960, %v823, %v1024
        %v1089 = vsel %vm961, %v827, %v1025
        %v1090 = vsel %vm962, %v829, %v1026
        %v1091 = vsel %vm963, %v831, %v1027
        %v1092 = vsel %vm964, %v833, %v1028
        %v1093 = vsel %vm965, %v837, %v1029
        %v1094 = vsel %vm966, %v839, %v1030
        %v1095 = vsel %vm967, %v841, %v1031
        %v1096 = vsel %vm968, %v843, %v1032
        %v1097 = vsel %vm969, %v847, %v1033
        %v1098 = vsel %vm970, %v849, %v1034
        %v1099 = vsel %vm971, %v851, %v1035
        %v1100 = vsel %vm972, %v853, %v1036
        %v1101 = vsel %vm973, %v857, %v1037
        %v1102 = vsel %vm974, %v859, %v1038
        %v1103 = vsel %vm975, %v861, %v1039
        %v1104 = vsel %vm976, %v863, %v1040
        %v1105 = vsel %vm977, %v867, %v1041
        %v1106 = vsel %vm978, %v869, %v1042
        %v1107 = vsel %vm979, %v871, %v1043
        %v1108 = vsel %vm980, %v873, %v1044
        %v1109 = vsel %vm981, %v877, %v1045
        %v1110 = vsel %vm982, %v879, %v1046
        %v1111 = vsel %vm983, %v881, %v1047
        %v1112 = vsel %vm984, %v883, %v1048
        %v1113 = vsel %vm985, %v887, %v1049
        %v1114 = vsel %vm986, %v889, %v1050
        %v1115 = vsel %vm987, %v891, %v1051
        %v1116 = vsel %vm988, %v893, %v1052
        %v1117 = vsel %vm989, %v897, %v1053
        %v1118 = vsel %vm990, %v899, %v1054
        %v1119 = vsel %vm991, %v901, %v1055
        %v1120 = vsel %vm992, %v903, %v1056
        %v1121 = vsel %vm993, %v907, %v1057
        %v1122 = vsel %vm994, %v909, %v1058
        %v1123 = vsel %vm995, %v911, %v1059
        %v1124 = vsel %vm996, %v913, %v1060
        %v1125 = vsel %vm997, %v917, %v1061
        %v1126 = vsel %vm998, %v919, %v1062
        %v1127 = vsel %vm999, %v921, %v1063
        %v1128 = vsel %vm1000, %v923, %v1064
        %v1129 = vsel %vm1001, %v927, %v1065
        %v1130 = vsel %vm1002, %v929, %v1066
        %v1131 = vsel %vm1003, %v931, %v1067
        %v1132 = vsel %vm1004, %v933, %v1068
        %v1133 = vsel %vm1005, %v937, %v1069
        %v1134 = vsel %vm1006, %v939, %v1070
        %v1135 = vsel %vm1007, %v941, %v1071
        %v1136 = vsel %vm1008, %v943, %v1072
        %1137 = vst [vmem:[%s321] sm:$0xff] %v1073
        %1138 = vst [vmem:[%s321 + $0x8] sm:$0xff] %v1074
        %1139 = vst [vmem:[%s321 + $0x10] sm:$0xff] %v1075
        %1140 = vst [vmem:[%s321 + $0x18] sm:$0xff] %v1076
        %1141 = vst [vmem:[%s321 + $0x20] sm:$0xff] %v1077
        %1142 = vst [vmem:[%s321 + $0x28] sm:$0xff] %v1078
        %1143 = vst [vmem:[%s321 + $0x30] sm:$0xff] %v1079
        %1144 = vst [vmem:[%s321 + $0x38] sm:$0xff] %v1080
        %1145 = vst [vmem:[%s321 + $0x40] sm:$0xff] %v1081
        %1146 = vst [vmem:[%s321 + $0x48] sm:$0xff] %v1082
        %1147 = vst [vmem:[%s321 + $0x50] sm:$0xff] %v1083
        %1148 = vst [vmem:[%s321 + $0x58] sm:$0xff] %v1084
        %1149 = vst [vmem:[%s321 + $0x60] sm:$0xff] %v1085
        %1150 = vst [vmem:[%s321 + $0x68] sm:$0xff] %v1086
        %1151 = vst [vmem:[%s321 + $0x70] sm:$0xff] %v1087
        %1152 = vst [vmem:[%s321 + $0x78] sm:$0xff] %v1088
        %1153 = vst [vmem:[%s321 + $0x80] sm:$0xff] %v1089
        %1154 = vst [vmem:[%s321 + $0x88] sm:$0xff] %v1090
        %1155 = vst [vmem:[%s321 + $0x90] sm:$0xff] %v1091
        %1156 = vst [vmem:[%s321 + $0x98] sm:$0xff] %v1092
        %1157 = vst [vmem:[%s321 + $0xa0] sm:$0xff] %v1093
        %1158 = vst [vmem:[%s321 + $0xa8] sm:$0xff] %v1094
        %1159 = vst [vmem:[%s321 + $0xb0] sm:$0xff] %v1095
        %1160 = vst [vmem:[%s321 + $0xb8] sm:$0xff] %v1096
        %1161 = vst [vmem:[%s321 + $0xc0] sm:$0xff] %v1097
        %1162 = vst [vmem:[%s321 + $0xc8] sm:$0xff] %v1098
        %1163 = vst [vmem:[%s321 + $0xd0] sm:$0xff] %v1099
        %1164 = vst [vmem:[%s321 + $0xd8] sm:$0xff] %v1100
        %1165 = vst [vmem:[%s321 + $0xe0] sm:$0xff] %v1101
        %1166 = vst [vmem:[%s321 + $0xe8] sm:$0xff] %v1102
        %1167 = vst [vmem:[%s321 + $0xf0] sm:$0xff] %v1103
        %1168 = vst [vmem:[%s321 + $0xf8] sm:$0xff] %v1104
        %1169 = vst [vmem:[%s321 + $0x100] sm:$0xff] %v1105
        %1170 = vst [vmem:[%s321 + $0x108] sm:$0xff] %v1106
        %1171 = vst [vmem:[%s321 + $0x110] sm:$0xff] %v1107
        %1172 = vst [vmem:[%s321 + $0x118] sm:$0xff] %v1108
        %1173 = vst [vmem:[%s321 + $0x120] sm:$0xff] %v1109
        %1174 = vst [vmem:[%s321 + $0x128] sm:$0xff] %v1110
        %1175 = vst [vmem:[%s321 + $0x130] sm:$0xff] %v1111
        %1176 = vst [vmem:[%s321 + $0x138] sm:$0xff] %v1112
        %1177 = vst [vmem:[%s321 + $0x140] sm:$0xff] %v1113
        %1178 = vst [vmem:[%s321 + $0x148] sm:$0xff] %v1114
        %1179 = vst [vmem:[%s321 + $0x150] sm:$0xff] %v1115
        %1180 = vst [vmem:[%s321 + $0x158] sm:$0xff] %v1116
        %1181 = vst [vmem:[%s321 + $0x160] sm:$0xff] %v1117
        %1182 = vst [vmem:[%s321 + $0x168] sm:$0xff] %v1118
        %1183 = vst [vmem:[%s321 + $0x170] sm:$0xff] %v1119
        %1184 = vst [vmem:[%s321 + $0x178] sm:$0xff] %v1120
        %1185 = vst [vmem:[%s321 + $0x180] sm:$0xff] %v1121
        %1186 = vst [vmem:[%s321 + $0x188] sm:$0xff] %v1122
        %1187 = vst [vmem:[%s321 + $0x190] sm:$0xff] %v1123
        %1188 = vst [vmem:[%s321 + $0x198] sm:$0xff] %v1124
        %1189 = vst [vmem:[%s321 + $0x1a0] sm:$0xff] %v1125
        %1190 = vst [vmem:[%s321 + $0x1a8] sm:$0xff] %v1126
        %1191 = vst [vmem:[%s321 + $0x1b0] sm:$0xff] %v1127
        %1192 = vst [vmem:[%s321 + $0x1b8] sm:$0xff] %v1128
        %1193 = vst [vmem:[%s321 + $0x1c0] sm:$0xff] %v1129
        %1194 = vst [vmem:[%s321 + $0x1c8] sm:$0xff] %v1130
        %1195 = vst [vmem:[%s321 + $0x1d0] sm:$0xff] %v1131
        %1196 = vst [vmem:[%s321 + $0x1d8] sm:$0xff] %v1132
        %1197 = vst [vmem:[%s321 + $0x1e0] sm:$0xff] %v1133
        %1198 = vst [vmem:[%s321 + $0x1e8] sm:$0xff] %v1134
        %1199 = vst [vmem:[%s321 + $0x1f0] sm:$0xff] %v1135
        %1200 = vst [vmem:[%s321 + $0x1f8] sm:$0xff] %v1136
        %s1201 = sld [smem:[#allocation2]]
        %v1202 = vld [vmem:[%s3] sm:$0x3]
        %v1204 = vlaneseq
        %v1205 = vshrl.u32 %v1204, 7
        %v1206 = vsub.s32 0, %v1205
        %v1207 = vrot.slane %v1202, %v1206
        %v1208 = vlaneseq
        %v1209 = vshrl.u32 %v1208, 7
        %v1210 = vsub.s32 1, %v1209
        %v1211 = vrot.slane %v1202, %v1210
        %v1214 = vmul.f32 %v1073, %v1207
        %v1215 = vmul.f32 %v1074, %v1211
        %v1216 = vmul.f32 %v1075, %v1207
        %v1217 = vmul.f32 %v1076, %v1211
        %v1218 = vmul.f32 %v1077, %v1207
        %v1219 = vmul.f32 %v1078, %v1211
        %v1220 = vmul.f32 %v1079, %v1207
        %v1221 = vmul.f32 %v1080, %v1211
        %v1222 = vmul.f32 %v1081, %v1207
        %v1223 = vmul.f32 %v1082, %v1211
        %v1224 = vmul.f32 %v1083, %v1207
        %v1225 = vmul.f32 %v1084, %v1211
        %v1226 = vmul.f32 %v1085, %v1207
        %v1227 = vmul.f32 %v1086, %v1211
        %v1228 = vmul.f32 %v1087, %v1207
        %v1229 = vmul.f32 %v1088, %v1211
        %v1230 = vmul.f32 %v1089, %v1207
        %v1231 = vmul.f32 %v1090, %v1211
        %v1232 = vmul.f32 %v1091, %v1207
        %v1233 = vmul.f32 %v1092, %v1211
        %v1234 = vmul.f32 %v1093, %v1207
        %v1235 = vmul.f32 %v1094, %v1211
        %v1236 = vmul.f32 %v1095, %v1207
        %v1237 = vmul.f32 %v1096, %v1211
        %v1238 = vmul.f32 %v1097, %v1207
        %v1239 = vmul.f32 %v1098, %v1211
        %v1240 = vmul.f32 %v1099, %v1207
        %v1241 = vmul.f32 %v1100, %v1211
        %v1242 = vmul.f32 %v1101, %v1207
        %v1243 = vmul.f32 %v1102, %v1211
        %v1244 = vmul.f32 %v1103, %v1207
        %v1245 = vmul.f32 %v1104, %v1211
        %v1246 = vmul.f32 %v1105, %v1207
        %v1247 = vmul.f32 %v1106, %v1211
        %v1248 = vmul.f32 %v1107, %v1207
        %v1249 = vmul.f32 %v1108, %v1211
        %v1250 = vmul.f32 %v1109, %v1207
        %v1251 = vmul.f32 %v1110, %v1211
        %v1252 = vmul.f32 %v1111, %v1207
        %v1253 = vmul.f32 %v1112, %v1211
        %v1254 = vmul.f32 %v1113, %v1207
        %v1255 = vmul.f32 %v1114, %v1211
        %v1256 = vmul.f32 %v1115, %v1207
        %v1257 = vmul.f32 %v1116, %v1211
        %v1258 = vmul.f32 %v1117, %v1207
        %v1259 = vmul.f32 %v1118, %v1211
        %v1260 = vmul.f32 %v1119, %v1207
        %v1261 = vmul.f32 %v1120, %v1211
        %v1262 = vmul.f32 %v1121, %v1207
        %v1263 = vmul.f32 %v1122, %v1211
        %v1264 = vmul.f32 %v1123, %v1207
        %v1265 = vmul.f32 %v1124, %v1211
        %v1266 = vmul.f32 %v1125, %v1207
        %v1267 = vmul.f32 %v1126, %v1211
        %v1268 = vmul.f32 %v1127, %v1207
        %v1269 = vmul.f32 %v1128, %v1211
        %v1270 = vmul.f32 %v1129, %v1207
        %v1271 = vmul.f32 %v1130, %v1211
        %v1272 = vmul.f32 %v1131, %v1207
        %v1273 = vmul.f32 %v1132, %v1211
        %v1274 = vmul.f32 %v1133, %v1207
        %v1275 = vmul.f32 %v1134, %v1211
        %v1276 = vmul.f32 %v1135, %v1207
        %v1277 = vmul.f32 %v1136, %v1211
        %v1278 = vadd.f32 %v1214, %v1215
        %1279 = vadd.xlane.f32.xlu0 %v1278
        %v1280 = vpop.xlane.xlu0 %1279
        %v1281 = vadd.f32 %v1216, %v1217
        %1282 = vadd.xlane.f32.xlu0 %v1281
        %v1283 = vpop.xlane.xlu0 %1282
        %v1284 = vadd.f32 %v1218, %v1219
        %1285 = vadd.xlane.f32.xlu0 %v1284
        %v1286 = vpop.xlane.xlu0 %1285
        %v1287 = vadd.f32 %v1220, %v1221
        %1288 = vadd.xlane.f32.xlu0 %v1287
        %v1289 = vpop.xlane.xlu0 %1288
        %v1290 = vadd.f32 %v1222, %v1223
        %1291 = vadd.xlane.f32.xlu0 %v1290
        %v1292 = vpop.xlane.xlu0 %1291
        %v1293 = vadd.f32 %v1224, %v1225
        %1294 = vadd.xlane.f32.xlu0 %v1293
        %v1295 = vpop.xlane.xlu0 %1294
        %v1296 = vadd.f32 %v1226, %v1227
        %1297 = vadd.xlane.f32.xlu0 %v1296
        %v1298 = vpop.xlane.xlu0 %1297
        %v1299 = vadd.f32 %v1228, %v1229
        %1300 = vadd.xlane.f32.xlu0 %v1299
        %v1301 = vpop.xlane.xlu0 %1300
        %v1302 = vadd.f32 %v1230, %v1231
        %1303 = vadd.xlane.f32.xlu0 %v1302
        %v1304 = vpop.xlane.xlu0 %1303
        %v1305 = vadd.f32 %v1232, %v1233
        %1306 = vadd.xlane.f32.xlu0 %v1305
        %v1307 = vpop.xlane.xlu0 %1306
        %v1308 = vadd.f32 %v1234, %v1235
        %1309 = vadd.xlane.f32.xlu0 %v1308
        %v1310 = vpop.xlane.xlu0 %1309
        %v1311 = vadd.f32 %v1236, %v1237
        %1312 = vadd.xlane.f32.xlu0 %v1311
        %v1313 = vpop.xlane.xlu0 %1312
        %v1314 = vadd.f32 %v1238, %v1239
        %1315 = vadd.xlane.f32.xlu0 %v1314
        %v1316 = vpop.xlane.xlu0 %1315
        %v1317 = vadd.f32 %v1240, %v1241
        %1318 = vadd.xlane.f32.xlu0 %v1317
        %v1319 = vpop.xlane.xlu0 %1318
        %v1320 = vadd.f32 %v1242, %v1243
        %1321 = vadd.xlane.f32.xlu0 %v1320
        %v1322 = vpop.xlane.xlu0 %1321
        %v1323 = vadd.f32 %v1244, %v1245
        %1324 = vadd.xlane.f32.xlu0 %v1323
        %v1325 = vpop.xlane.xlu0 %1324
        %v1326 = vadd.f32 %v1246, %v1247
        %1327 = vadd.xlane.f32.xlu0 %v1326
        %v1328 = vpop.xlane.xlu0 %1327
        %v1329 = vadd.f32 %v1248, %v1249
        %1330 = vadd.xlane.f32.xlu0 %v1329
        %v1331 = vpop.xlane.xlu0 %1330
        %v1332 = vadd.f32 %v1250, %v1251
        %1333 = vadd.xlane.f32.xlu0 %v1332
        %v1334 = vpop.xlane.xlu0 %1333
        %v1335 = vadd.f32 %v1252, %v1253
        %1336 = vadd.xlane.f32.xlu0 %v1335
        %v1337 = vpop.xlane.xlu0 %1336
        %v1338 = vadd.f32 %v1254, %v1255
        %1339 = vadd.xlane.f32.xlu0 %v1338
        %v1340 = vpop.xlane.xlu0 %1339
        %v1341 = vadd.f32 %v1256, %v1257
        %1342 = vadd.xlane.f32.xlu0 %v1341
        %v1343 = vpop.xlane.xlu0 %1342
        %v1344 = vadd.f32 %v1258, %v1259
        %1345 = vadd.xlane.f32.xlu0 %v1344
        %v1346 = vpop.xlane.xlu0 %1345
        %v1347 = vadd.f32 %v1260, %v1261
        %1348 = vadd.xlane.f32.xlu0 %v1347
        %v1349 = vpop.xlane.xlu0 %1348
        %v1350 = vadd.f32 %v1262, %v1263
        %1351 = vadd.xlane.f32.xlu0 %v1350
        %v1352 = vpop.xlane.xlu0 %1351
        %v1353 = vadd.f32 %v1264, %v1265
        %1354 = vadd.xlane.f32.xlu0 %v1353
        %v1355 = vpop.xlane.xlu0 %1354
        %v1356 = vadd.f32 %v1266, %v1267
        %1357 = vadd.xlane.f32.xlu0 %v1356
        %v1358 = vpop.xlane.xlu0 %1357
        %v1359 = vadd.f32 %v1268, %v1269
        %1360 = vadd.xlane.f32.xlu0 %v1359
        %v1361 = vpop.xlane.xlu0 %1360
        %v1362 = vadd.f32 %v1270, %v1271
        %1363 = vadd.xlane.f32.xlu0 %v1362
        %v1364 = vpop.xlane.xlu0 %1363
        %v1365 = vadd.f32 %v1272, %v1273
        %1366 = vadd.xlane.f32.xlu0 %v1365
        %v1367 = vpop.xlane.xlu0 %1366
        %v1368 = vadd.f32 %v1274, %v1275
        %1369 = vadd.xlane.f32.xlu0 %v1368
        %v1370 = vpop.xlane.xlu0 %1369
        %v1371 = vadd.f32 %v1276, %v1277
        %1372 = vadd.xlane.f32.xlu0 %v1371
        %v1373 = vpop.xlane.xlu0 %1372
        %v1374 = vstv %s1201
        %v1375 = vadd.f32 %v1280, %v1374
        %v1376 = vadd.f32 %v1283, %v1374
        %v1377 = vadd.f32 %v1286, %v1374
        %v1378 = vadd.f32 %v1289, %v1374
        %v1379 = vadd.f32 %v1292, %v1374
        %v1380 = vadd.f32 %v1295, %v1374
        %v1381 = vadd.f32 %v1298, %v1374
        %v1382 = vadd.f32 %v1301, %v1374
        %v1383 = vadd.f32 %v1304, %v1374
        %v1384 = vadd.f32 %v1307, %v1374
        %v1385 = vadd.f32 %v1310, %v1374
        %v1386 = vadd.f32 %v1313, %v1374
        %v1387 = vadd.f32 %v1316, %v1374
        %v1388 = vadd.f32 %v1319, %v1374
        %v1389 = vadd.f32 %v1322, %v1374
        %v1390 = vadd.f32 %v1325, %v1374
        %v1391 = vadd.f32 %v1328, %v1374
        %v1392 = vadd.f32 %v1331, %v1374
        %v1393 = vadd.f32 %v1334, %v1374
        %v1394 = vadd.f32 %v1337, %v1374
        %v1395 = vadd.f32 %v1340, %v1374
        %v1396 = vadd.f32 %v1343, %v1374
        %v1397 = vadd.f32 %v1346, %v1374
        %v1398 = vadd.f32 %v1349, %v1374
        %v1399 = vadd.f32 %v1352, %v1374
        %v1400 = vadd.f32 %v1355, %v1374
        %v1401 = vadd.f32 %v1358, %v1374
        %v1402 = vadd.f32 %v1361, %v1374
        %v1403 = vadd.f32 %v1364, %v1374
        %v1404 = vadd.f32 %v1367, %v1374
        %v1405 = vadd.f32 %v1370, %v1374
        %v1406 = vadd.f32 %v1373, %v1374
        %vm1407 = vcmask 7168
        %1408 = vst.msk [vmem:[%s327] sm:$0xff] %vm1407, %v1375
        %1409 = vst.msk [vmem:[%s327 + $0x8] sm:$0xff] %vm1407, %v1376
        %1410 = vst.msk [vmem:[%s327 + $0x10] sm:$0xff] %vm1407, %v1377
        %1411 = vst.msk [vmem:[%s327 + $0x18] sm:$0xff] %vm1407, %v1378
        %1412 = vst.msk [vmem:[%s327 + $0x20] sm:$0xff] %vm1407, %v1379
        %1413 = vst.msk [vmem:[%s327 + $0x28] sm:$0xff] %vm1407, %v1380
        %1414 = vst.msk [vmem:[%s327 + $0x30] sm:$0xff] %vm1407, %v1381
        %1415 = vst.msk [vmem:[%s327 + $0x38] sm:$0xff] %vm1407, %v1382
        %1416 = vst.msk [vmem:[%s327 + $0x40] sm:$0xff] %vm1407, %v1383
        %1417 = vst.msk [vmem:[%s327 + $0x48] sm:$0xff] %vm1407, %v1384
        %1418 = vst.msk [vmem:[%s327 + $0x50] sm:$0xff] %vm1407, %v1385
        %1419 = vst.msk [vmem:[%s327 + $0x58] sm:$0xff] %vm1407, %v1386
        %1420 = vst.msk [vmem:[%s327 + $0x60] sm:$0xff] %vm1407, %v1387
        %1421 = vst.msk [vmem:[%s327 + $0x68] sm:$0xff] %vm1407, %v1388
        %1422 = vst.msk [vmem:[%s327 + $0x70] sm:$0xff] %vm1407, %v1389
        %1423 = vst.msk [vmem:[%s327 + $0x78] sm:$0xff] %vm1407, %v1390
        %1424 = vst.msk [vmem:[%s327 + $0x80] sm:$0xff] %vm1407, %v1391
        %1425 = vst.msk [vmem:[%s327 + $0x88] sm:$0xff] %vm1407, %v1392
        %1426 = vst.msk [vmem:[%s327 + $0x90] sm:$0xff] %vm1407, %v1393
        %1427 = vst.msk [vmem:[%s327 + $0x98] sm:$0xff] %vm1407, %v1394
        %1428 = vst.msk [vmem:[%s327 + $0xa0] sm:$0xff] %vm1407, %v1395
        %1429 = vst.msk [vmem:[%s327 + $0xa8] sm:$0xff] %vm1407, %v1396
        %1430 = vst.msk [vmem:[%s327 + $0xb0] sm:$0xff] %vm1407, %v1397
        %1431 = vst.msk [vmem:[%s327 + $0xb8] sm:$0xff] %vm1407, %v1398
        %1432 = vst.msk [vmem:[%s327 + $0xc0] sm:$0xff] %vm1407, %v1399
        %1433 = vst.msk [vmem:[%s327 + $0xc8] sm:$0xff] %vm1407, %v1400
        %1434 = vst.msk [vmem:[%s327 + $0xd0] sm:$0xff] %vm1407, %v1401
        %1435 = vst.msk [vmem:[%s327 + $0xd8] sm:$0xff] %vm1407, %v1402
        %1436 = vst.msk [vmem:[%s327 + $0xe0] sm:$0xff] %vm1407, %v1403
        %1437 = vst.msk [vmem:[%s327 + $0xe8] sm:$0xff] %vm1407, %v1404
        %1438 = vst.msk [vmem:[%s327 + $0xf0] sm:$0xff] %vm1407, %v1405
        %1439 = vst.msk [vmem:[%s327 + $0xf8] sm:$0xff] %vm1407, %v1406
        %v1440 = vxor.u32 %v1375, 2147483648
        %v1441 = vxor.u32 %v1376, 2147483648
        %v1442 = vxor.u32 %v1377, 2147483648
        %v1443 = vxor.u32 %v1378, 2147483648
        %v1444 = vxor.u32 %v1379, 2147483648
        %v1445 = vxor.u32 %v1380, 2147483648
        %v1446 = vxor.u32 %v1381, 2147483648
        %v1447 = vxor.u32 %v1382, 2147483648
        %v1448 = vxor.u32 %v1383, 2147483648
        %v1449 = vxor.u32 %v1384, 2147483648
        %v1450 = vxor.u32 %v1385, 2147483648
        %v1451 = vxor.u32 %v1386, 2147483648
        %v1452 = vxor.u32 %v1387, 2147483648
        %v1453 = vxor.u32 %v1388, 2147483648
        %v1454 = vxor.u32 %v1389, 2147483648
        %v1455 = vxor.u32 %v1390, 2147483648
        %v1456 = vxor.u32 %v1391, 2147483648
        %v1457 = vxor.u32 %v1392, 2147483648
        %v1458 = vxor.u32 %v1393, 2147483648
        %v1459 = vxor.u32 %v1394, 2147483648
        %v1460 = vxor.u32 %v1395, 2147483648
        %v1461 = vxor.u32 %v1396, 2147483648
        %v1462 = vxor.u32 %v1397, 2147483648
        %v1463 = vxor.u32 %v1398, 2147483648
        %v1464 = vxor.u32 %v1399, 2147483648
        %v1465 = vxor.u32 %v1400, 2147483648
        %v1466 = vxor.u32 %v1401, 2147483648
        %v1467 = vxor.u32 %v1402, 2147483648
        %v1468 = vxor.u32 %v1403, 2147483648
        %v1469 = vxor.u32 %v1404, 2147483648
        %v1470 = vxor.u32 %v1405, 2147483648
        %v1471 = vxor.u32 %v1406, 2147483648
        %v1472 = vmul.f32 %v1440, 1.442695
        %v1473 = vpow.pop %v1472
        %v1474 = vmul.f32 %v1441, 1.442695
        %v1475 = vpow.pop %v1474
        %v1476 = vmul.f32 %v1442, 1.442695
        %v1477 = vpow.pop %v1476
        %v1478 = vmul.f32 %v1443, 1.442695
        %v1479 = vpow.pop %v1478
        %v1480 = vmul.f32 %v1444, 1.442695
        %v1481 = vpow.pop %v1480
        %v1482 = vmul.f32 %v1445, 1.442695
        %v1483 = vpow.pop %v1482
        %v1484 = vmul.f32 %v1446, 1.442695
        %v1485 = vpow.pop %v1484
        %v1486 = vmul.f32 %v1447, 1.442695
        %v1487 = vpow.pop %v1486
        %v1488 = vmul.f32 %v1448, 1.442695
        %v1489 = vpow.pop %v1488
        %v1490 = vmul.f32 %v1449, 1.442695
        %v1491 = vpow.pop %v1490
        %v1492 = vmul.f32 %v1450, 1.442695
        %v1493 = vpow.pop %v1492
        %v1494 = vmul.f32 %v1451, 1.442695
        %v1495 = vpow.pop %v1494
        %v1496 = vmul.f32 %v1452, 1.442695
        %v1497 = vpow.pop %v1496
        %v1498 = vmul.f32 %v1453, 1.442695
        %v1499 = vpow.pop %v1498
        %v1500 = vmul.f32 %v1454, 1.442695
        %v1501 = vpow.pop %v1500
        %v1502 = vmul.f32 %v1455, 1.442695
        %v1503 = vpow.pop %v1502
        %v1504 = vmul.f32 %v1456, 1.442695
        %v1505 = vpow.pop %v1504
        %v1506 = vmul.f32 %v1457, 1.442695
        %v1507 = vpow.pop %v1506
        %v1508 = vmul.f32 %v1458, 1.442695
        %v1509 = vpow.pop %v1508
        %v1510 = vmul.f32 %v1459, 1.442695
        %v1511 = vpow.pop %v1510
        %v1512 = vmul.f32 %v1460, 1.442695
        %v1513 = vpow.pop %v1512
        %v1514 = vmul.f32 %v1461, 1.442695
        %v1515 = vpow.pop %v1514
        %v1516 = vmul.f32 %v1462, 1.442695
        %v1517 = vpow.pop %v1516
        %v1518 = vmul.f32 %v1463, 1.442695
        %v1519 = vpow.pop %v1518
        %v1520 = vmul.f32 %v1464, 1.442695
        %v1521 = vpow.pop %v1520
        %v1522 = vmul.f32 %v1465, 1.442695
        %v1523 = vpow.pop %v1522
        %v1524 = vmul.f32 %v1466, 1.442695
        %v1525 = vpow.pop %v1524
        %v1526 = vmul.f32 %v1467, 1.442695
        %v1527 = vpow.pop %v1526
        %v1528 = vmul.f32 %v1468, 1.442695
        %v1529 = vpow.pop %v1528
        %v1530 = vmul.f32 %v1469, 1.442695
        %v1531 = vpow.pop %v1530
        %v1532 = vmul.f32 %v1470, 1.442695
        %v1533 = vpow.pop %v1532
        %v1534 = vmul.f32 %v1471, 1.442695
        %v1535 = vpow.pop %v1534
        %v1536 = vadd.f32 %v1473, 1.0
        %v1537 = vadd.f32 %v1475, 1.0
        %v1538 = vadd.f32 %v1477, 1.0
        %v1539 = vadd.f32 %v1479, 1.0
        %v1540 = vadd.f32 %v1481, 1.0
        %v1541 = vadd.f32 %v1483, 1.0
        %v1542 = vadd.f32 %v1485, 1.0
        %v1543 = vadd.f32 %v1487, 1.0
        %v1544 = vadd.f32 %v1489, 1.0
        %v1545 = vadd.f32 %v1491, 1.0
        %v1546 = vadd.f32 %v1493, 1.0
        %v1547 = vadd.f32 %v1495, 1.0
        %v1548 = vadd.f32 %v1497, 1.0
        %v1549 = vadd.f32 %v1499, 1.0
        %v1550 = vadd.f32 %v1501, 1.0
        %v1551 = vadd.f32 %v1503, 1.0
        %v1552 = vadd.f32 %v1505, 1.0
        %v1553 = vadd.f32 %v1507, 1.0
        %v1554 = vadd.f32 %v1509, 1.0
        %v1555 = vadd.f32 %v1511, 1.0
        %v1556 = vadd.f32 %v1513, 1.0
        %v1557 = vadd.f32 %v1515, 1.0
        %v1558 = vadd.f32 %v1517, 1.0
        %v1559 = vadd.f32 %v1519, 1.0
        %v1560 = vadd.f32 %v1521, 1.0
        %v1561 = vadd.f32 %v1523, 1.0
        %v1562 = vadd.f32 %v1525, 1.0
        %v1563 = vadd.f32 %v1527, 1.0
        %v1564 = vadd.f32 %v1529, 1.0
        %v1565 = vadd.f32 %v1531, 1.0
        %v1566 = vadd.f32 %v1533, 1.0
        %v1567 = vadd.f32 %v1535, 1.0
        %v1568 = vrcp.pop %v1536
        %v1569 = vmul.f32 1.0, %v1568
        %v1570 = vrcp.pop %v1537
        %v1571 = vmul.f32 1.0, %v1570
        %v1572 = vrcp.pop %v1538
        %v1573 = vmul.f32 1.0, %v1572
        %v1574 = vrcp.pop %v1539
        %v1575 = vmul.f32 1.0, %v1574
        %v1576 = vrcp.pop %v1540
        %v1577 = vmul.f32 1.0, %v1576
        %v1578 = vrcp.pop %v1541
        %v1579 = vmul.f32 1.0, %v1578
        %v1580 = vrcp.pop %v1542
        %v1581 = vmul.f32 1.0, %v1580
        %v1582 = vrcp.pop %v1543
        %v1583 = vmul.f32 1.0, %v1582
        %v1584 = vrcp.pop %v1544
        %v1585 = vmul.f32 1.0, %v1584
        %v1586 = vrcp.pop %v1545
        %v1587 = vmul.f32 1.0, %v1586
        %v1588 = vrcp.pop %v1546
        %v1589 = vmul.f32 1.0, %v1588
        %v1590 = vrcp.pop %v1547
        %v1591 = vmul.f32 1.0, %v1590
        %v1592 = vrcp.pop %v1548
        %v1593 = vmul.f32 1.0, %v1592
        %v1594 = vrcp.pop %v1549
        %v1595 = vmul.f32 1.0, %v1594
        %v1596 = vrcp.pop %v1550
        %v1597 = vmul.f32 1.0, %v1596
        %v1598 = vrcp.pop %v1551
        %v1599 = vmul.f32 1.0, %v1598
        %v1600 = vrcp.pop %v1552
        %v1601 = vmul.f32 1.0, %v1600
        %v1602 = vrcp.pop %v1553
        %v1603 = vmul.f32 1.0, %v1602
        %v1604 = vrcp.pop %v1554
        %v1605 = vmul.f32 1.0, %v1604
        %v1606 = vrcp.pop %v1555
        %v1607 = vmul.f32 1.0, %v1606
        %v1608 = vrcp.pop %v1556
        %v1609 = vmul.f32 1.0, %v1608
        %v1610 = vrcp.pop %v1557
        %v1611 = vmul.f32 1.0, %v1610
        %v1612 = vrcp.pop %v1558
        %v1613 = vmul.f32 1.0, %v1612
        %v1614 = vrcp.pop %v1559
        %v1615 = vmul.f32 1.0, %v1614
        %v1616 = vrcp.pop %v1560
        %v1617 = vmul.f32 1.0, %v1616
        %v1618 = vrcp.pop %v1561
        %v1619 = vmul.f32 1.0, %v1618
        %v1620 = vrcp.pop %v1562
        %v1621 = vmul.f32 1.0, %v1620
        %v1622 = vrcp.pop %v1563
        %v1623 = vmul.f32 1.0, %v1622
        %v1624 = vrcp.pop %v1564
        %v1625 = vmul.f32 1.0, %v1624
        %v1626 = vrcp.pop %v1565
        %v1627 = vmul.f32 1.0, %v1626
        %v1628 = vrcp.pop %v1566
        %v1629 = vmul.f32 1.0, %v1628
        %v1630 = vrcp.pop %v1567
        %v1631 = vmul.f32 1.0, %v1630
        %1632 = vst.msk [vmem:[%s333] sm:$0xff] %vm1407, %v1569
        %1633 = vst.msk [vmem:[%s333 + $0x8] sm:$0xff] %vm1407, %v1571
        %1634 = vst.msk [vmem:[%s333 + $0x10] sm:$0xff] %vm1407, %v1573
        %1635 = vst.msk [vmem:[%s333 + $0x18] sm:$0xff] %vm1407, %v1575
        %1636 = vst.msk [vmem:[%s333 + $0x20] sm:$0xff] %vm1407, %v1577
        %1637 = vst.msk [vmem:[%s333 + $0x28] sm:$0xff] %vm1407, %v1579
        %1638 = vst.msk [vmem:[%s333 + $0x30] sm:$0xff] %vm1407, %v1581
        %1639 = vst.msk [vmem:[%s333 + $0x38] sm:$0xff] %vm1407, %v1583
        %1640 = vst.msk [vmem:[%s333 + $0x40] sm:$0xff] %vm1407, %v1585
        %1641 = vst.msk [vmem:[%s333 + $0x48] sm:$0xff] %vm1407, %v1587
        %1642 = vst.msk [vmem:[%s333 + $0x50] sm:$0xff] %vm1407, %v1589
        %1643 = vst.msk [vmem:[%s333 + $0x58] sm:$0xff] %vm1407, %v1591
        %1644 = vst.msk [vmem:[%s333 + $0x60] sm:$0xff] %vm1407, %v1593
        %1645 = vst.msk [vmem:[%s333 + $0x68] sm:$0xff] %vm1407, %v1595
        %1646 = vst.msk [vmem:[%s333 + $0x70] sm:$0xff] %vm1407, %v1597
        %1647 = vst.msk [vmem:[%s333 + $0x78] sm:$0xff] %vm1407, %v1599
        %1648 = vst.msk [vmem:[%s333 + $0x80] sm:$0xff] %vm1407, %v1601
        %1649 = vst.msk [vmem:[%s333 + $0x88] sm:$0xff] %vm1407, %v1603
        %1650 = vst.msk [vmem:[%s333 + $0x90] sm:$0xff] %vm1407, %v1605
        %1651 = vst.msk [vmem:[%s333 + $0x98] sm:$0xff] %vm1407, %v1607
        %1652 = vst.msk [vmem:[%s333 + $0xa0] sm:$0xff] %vm1407, %v1609
        %1653 = vst.msk [vmem:[%s333 + $0xa8] sm:$0xff] %vm1407, %v1611
        %1654 = vst.msk [vmem:[%s333 + $0xb0] sm:$0xff] %vm1407, %v1613
        %1655 = vst.msk [vmem:[%s333 + $0xb8] sm:$0xff] %vm1407, %v1615
        %1656 = vst.msk [vmem:[%s333 + $0xc0] sm:$0xff] %vm1407, %v1617
        %1657 = vst.msk [vmem:[%s333 + $0xc8] sm:$0xff] %vm1407, %v1619
        %1658 = vst.msk [vmem:[%s333 + $0xd0] sm:$0xff] %vm1407, %v1621
        %1659 = vst.msk [vmem:[%s333 + $0xd8] sm:$0xff] %vm1407, %v1623
        %1660 = vst.msk [vmem:[%s333 + $0xe0] sm:$0xff] %vm1407, %v1625
        %1661 = vst.msk [vmem:[%s333 + $0xe8] sm:$0xff] %vm1407, %v1627
        %1662 = vst.msk [vmem:[%s333 + $0xf0] sm:$0xff] %vm1407, %v1629
        %1663 = vst.msk [vmem:[%s333 + $0xf8] sm:$0xff] %vm1407, %v1631
        %s1664 = sand.u32 %s145, 1
        %s1665 = scalar_lea.sflag [#allocation5], %s1664
        %s1666 = sand.u32 %s145, 1
        %s1667 = smul.addr %s1666, 512
        %s1668 = scalar_lea.vmem [#allocation8], %s1667
        %s1669 = sand.u32 %s171, 1
        %s1670 = sand.u32 %s171, 1
        %s1671 = smul.addr %s1670, 256
        %s1672 = scalar_lea.vmem [#allocation9], %s1671
        %s1673 = sand.u32 %s197, 1
        %s1674 = sand.u32 %s197, 1
        %s1675 = smul.addr %s1674, 256
        %s1676 = scalar_lea.vmem [#allocation10], %s1675
        // Predicated region
        $region49: #{tpu_custom_call.1} parent=39 // pred_check
          %p1677 = pneg %p155
        $region50: #{tpu_custom_call.1} parent=39 // pred_check_branch
          %1679 = sbr.rel (%p1677) target = $region52
        $region51: #{tpu_custom_call.1} parent=39 // pred_region
          %s1680 = smul.u32 32, %s27
          %s1681 = ssub.s32 63, %s1680
          %p1682 = scmp.lt.s32.totalorder %s1681, 32
          %s1683 = scalar_select %p1682, %s1681, 32
          %s1684 = smul.u32 128, %s1683
          %s1685 = smul.u32 %s1684, 2
          %s1687 = ssub.s32 8192, %s1685
          %1688 = vsyncadd %s1665, %s1687
          %p1689 = scmp.ne.s32.totalorder 0, %s1685
          %s1690 = smul.addr %s1680, 2
          %s1691 = smul.addr %s1690, 128
          %s1692 = scalar_lea.hbm %s5, %s1691
          %s1693 = smul.u32 16, %s1683
          %s1694 = sshll.u32 %s1668, 4
          %s1695 = int_to_ptr.vmem [resolvable:$true] %s1694
          %s1696 = sshll.u32 %s1693, 4
          %1700 = dma.vmem_to_hbm [thread:$0]  (%p1689), %s1695, %s1696, %s1692, %s1665, 256, 256, 16
        $region52: #{tpu_custom_call.1} parent=39 // pred_fallthru
          _
        // Predicated region
        $region53: #{tpu_custom_call.1} parent=39 // pred_check
          %p1701 = pneg %p181
        $region54: #{tpu_custom_call.1} parent=39 // pred_check_branch
          %1703 = sbr.rel (%p1701) target = $region56
        $region55: #{tpu_custom_call.1} parent=39 // pred_region
          %s1704 = smul.u32 32, %s27
          %s1705 = ssub.s32 63, %s1704
          %p1706 = scmp.lt.s32.totalorder %s1705, 32
          %s1707 = scalar_select %p1706, %s1705, 32
          %s1708 = smul.u32 128, %s1707
          %p1709 = scmp.ne.s32.totalorder 0, %s1708
          %s1710 = smul.addr %s1704, 8
          %s1711 = scalar_lea.vmem %s6, %s1710
          // Predicated region
          $region57: #{tpu_custom_call.1} parent=55 // pred_check
            %p1712 = pneg %p1709
          $region58: #{tpu_custom_call.1} parent=55 // pred_check_branch
            %1714 = sbr.rel (%p1712) target = $region60
          $region59: #{tpu_custom_call.1} parent=55 // pred_region
            // Predicated region
            $region61: #{tpu_custom_call.1} parent=59 // pred_check
              _
            $region62: #{tpu_custom_call.1} parent=59 // pred_check_branch
              %1716 = sbr.rel (0) target = $region64
            $region63: #{tpu_custom_call.1} parent=59 // pred_region
              // Predicated region
              $region83: #{tpu_custom_call.1} parent=63 // pred_check
                _
              $region84: #{tpu_custom_call.1} parent=63 // pred_check_branch
                %1827 = sbr.rel (0) target = $region86
              $region85: #{tpu_custom_call.1} parent=63 // pred_region
                %s1828 = sshrl.u32 %s1707, 5
                // While loop
                $region87: #{tpu_custom_call.1} parent=85 // loop_pre_header
                  _
                $region88: #{tpu_custom_call.1} parent=85 // loop_header
                  %s1830 = sphi 0, %s1832
                  %p1831 = scmp.ge.s32.totalorder %s1830, %s1828
                  %s1835 = sphi 0, %s1904
                  %s1836 = sphi %s1672, %s1907
                  %s1837 = sphi %s1711, %s1908
                $region89: #{tpu_custom_call.1} parent=85 // loop_header_branch
                  %1834 = sbr.rel (%p1831) target = $region93
                $region90: #{tpu_custom_call.1} parent=85 // loop_body
                  %v1838 = vld [vmem:[%s1836] sm:$0xff]
                  %1839 = vst [vmem:[%s1837] sm:$0xff] %v1838
                  %v1840 = vld [vmem:[%s1836 + $0x8] sm:$0xff]
                  %1841 = vst [vmem:[%s1837 + $0x8] sm:$0xff] %v1840
                  %v1842 = vld [vmem:[%s1836 + $0x10] sm:$0xff]
                  %1843 = vst [vmem:[%s1837 + $0x10] sm:$0xff] %v1842
                  %v1844 = vld [vmem:[%s1836 + $0x18] sm:$0xff]
                  %1845 = vst [vmem:[%s1837 + $0x18] sm:$0xff] %v1844
                  %v1846 = vld [vmem:[%s1836 + $0x20] sm:$0xff]
                  %1847 = vst [vmem:[%s1837 + $0x20] sm:$0xff] %v1846
                  %v1848 = vld [vmem:[%s1836 + $0x28] sm:$0xff]
                  %1849 = vst [vmem:[%s1837 + $0x28] sm:$0xff] %v1848
                  %v1850 = vld [vmem:[%s1836 + $0x30] sm:$0xff]
                  %1851 = vst [vmem:[%s1837 + $0x30] sm:$0xff] %v1850
                  %v1852 = vld [vmem:[%s1836 + $0x38] sm:$0xff]
                  %1853 = vst [vmem:[%s1837 + $0x38] sm:$0xff] %v1852
                  %v1854 = vld [vmem:[%s1836 + $0x40] sm:$0xff]
                  %1855 = vst [vmem:[%s1837 + $0x40] sm:$0xff] %v1854
                  %v1856 = vld [vmem:[%s1836 + $0x48] sm:$0xff]
                  %1857 = vst [vmem:[%s1837 + $0x48] sm:$0xff] %v1856
                  %v1858 = vld [vmem:[%s1836 + $0x50] sm:$0xff]
                  %1859 = vst [vmem:[%s1837 + $0x50] sm:$0xff] %v1858
                  %v1860 = vld [vmem:[%s1836 + $0x58] sm:$0xff]
                  %1861 = vst [vmem:[%s1837 + $0x58] sm:$0xff] %v1860
                  %v1862 = vld [vmem:[%s1836 + $0x60] sm:$0xff]
                  %1863 = vst [vmem:[%s1837 + $0x60] sm:$0xff] %v1862
                  %v1864 = vld [vmem:[%s1836 + $0x68] sm:$0xff]
                  %1865 = vst [vmem:[%s1837 + $0x68] sm:$0xff] %v1864
                  %v1866 = vld [vmem:[%s1836 + $0x70] sm:$0xff]
                  %1867 = vst [vmem:[%s1837 + $0x70] sm:$0xff] %v1866
                  %v1868 = vld [vmem:[%s1836 + $0x78] sm:$0xff]
                  %1869 = vst [vmem:[%s1837 + $0x78] sm:$0xff] %v1868
                  %v1870 = vld [vmem:[%s1836 + $0x80] sm:$0xff]
                  %1871 = vst [vmem:[%s1837 + $0x80] sm:$0xff] %v1870
                  %v1872 = vld [vmem:[%s1836 + $0x88] sm:$0xff]
                  %1873 = vst [vmem:[%s1837 + $0x88] sm:$0xff] %v1872
                  %v1874 = vld [vmem:[%s1836 + $0x90] sm:$0xff]
                  %1875 = vst [vmem:[%s1837 + $0x90] sm:$0xff] %v1874
                  %v1876 = vld [vmem:[%s1836 + $0x98] sm:$0xff]
                  %1877 = vst [vmem:[%s1837 + $0x98] sm:$0xff] %v1876
                  %v1878 = vld [vmem:[%s1836 + $0xa0] sm:$0xff]
                  %1879 = vst [vmem:[%s1837 + $0xa0] sm:$0xff] %v1878
                  %v1880 = vld [vmem:[%s1836 + $0xa8] sm:$0xff]
                  %1881 = vst [vmem:[%s1837 + $0xa8] sm:$0xff] %v1880
                  %v1882 = vld [vmem:[%s1836 + $0xb0] sm:$0xff]
                  %1883 = vst [vmem:[%s1837 + $0xb0] sm:$0xff] %v1882
                  %v1884 = vld [vmem:[%s1836 + $0xb8] sm:$0xff]
                  %1885 = vst [vmem:[%s1837 + $0xb8] sm:$0xff] %v1884
                  %v1886 = vld [vmem:[%s1836 + $0xc0] sm:$0xff]
                  %1887 = vst [vmem:[%s1837 + $0xc0] sm:$0xff] %v1886
                  %v1888 = vld [vmem:[%s1836 + $0xc8] sm:$0xff]
                  %1889 = vst [vmem:[%s1837 + $0xc8] sm:$0xff] %v1888
                  %v1890 = vld [vmem:[%s1836 + $0xd0] sm:$0xff]
                  %1891 = vst [vmem:[%s1837 + $0xd0] sm:$0xff] %v1890
                  %v1892 = vld [vmem:[%s1836 + $0xd8] sm:$0xff]
                  %1893 = vst [vmem:[%s1837 + $0xd8] sm:$0xff] %v1892
                  %v1894 = vld [vmem:[%s1836 + $0xe0] sm:$0xff]
                  %1895 = vst [vmem:[%s1837 + $0xe0] sm:$0xff] %v1894
                  %v1896 = vld [vmem:[%s1836 + $0xe8] sm:$0xff]
                  %1897 = vst [vmem:[%s1837 + $0xe8] sm:$0xff] %v1896
                  %v1898 = vld [vmem:[%s1836 + $0xf0] sm:$0xff]
                  %1899 = vst [vmem:[%s1837 + $0xf0] sm:$0xff] %v1898
                  %v1900 = vld [vmem:[%s1836 + $0xf8] sm:$0xff]
                  %1901 = vst [vmem:[%s1837 + $0xf8] sm:$0xff] %v1900
                  %s1902 = sadd.s32 1, %s1835
                  %p1903 = scmp.ge.s32.totalorder %s1902, %s1828
                  %s1904 = scalar_select %p1903, 0, %s1902
                  %s1905 = smul.u32 %s1904, 256
                  %s1906 = smul.u32 %s1904, 256
                  %s1907 = scalar_lea.vmem %s1672, %s1905 [#allocation9]
                  %s1908 = scalar_lea.vmem %s1711, %s1906
                $region91: #{tpu_custom_call.1} parent=85 // loop_footer
                  %s1832 = sadd.s32 %s1830, 1
                $region92: #{tpu_custom_call.1} parent=85 // loop_footer_branch
                  %1829 = sbr.rel target = $region88
                $region93: #{tpu_custom_call.1} parent=85 // loop_exit
                  _
                %s1909 = sshrl.u32 %s1707, 5
                %s1910 = sand.u32 %s1707, 31
                %s1911 = smul.u32 %s1909, 32
                %s1912 = smul.u32 8, %s1911
                %s1913 = scalar_lea.vmem %s1672, %s1912 [#allocation9]
                %s1914 = smul.u32 8, %s1911
                %s1915 = scalar_lea.vmem %s1711, %s1914
                // While loop
                $region94: #{tpu_custom_call.1} parent=85 // loop_pre_header
                  _
                $region95: #{tpu_custom_call.1} parent=85 // loop_header
                  %s1917 = sphi 0, %s1919
                  %p1918 = scmp.ge.s32.totalorder %s1917, %s1910
                  %s1922 = sphi 0, %s1929
                  %s1923 = sphi %s1913, %s1932
                  %s1924 = sphi %s1915, %s1933
                $region96: #{tpu_custom_call.1} parent=85 // loop_header_branch
                  %1921 = sbr.rel (%p1918) target = $region100
                $region97: #{tpu_custom_call.1} parent=85 // loop_body
                  %v1925 = vld [vmem:[%s1923] sm:$0xff]
                  %1926 = vst [vmem:[%s1924] sm:$0xff] %v1925
                  %s1927 = sadd.s32 1, %s1922
                  %p1928 = scmp.ge.s32.totalorder %s1927, %s1910
                  %s1929 = scalar_select %p1928, 0, %s1927
                  %s1930 = smul.u32 %s1929, 8
                  %s1931 = smul.u32 %s1929, 8
                  %s1932 = scalar_lea.vmem %s1913, %s1930 [#allocation9]
                  %s1933 = scalar_lea.vmem %s1915, %s1931
                $region98: #{tpu_custom_call.1} parent=85 // loop_footer
                  %s1919 = sadd.s32 %s1917, 1
                $region99: #{tpu_custom_call.1} parent=85 // loop_footer_branch
                  %1916 = sbr.rel target = $region95
                $region100: #{tpu_custom_call.1} parent=85 // loop_exit
                  _
              $region86: #{tpu_custom_call.1} parent=63 // pred_fallthru
                _
              // Predicated region
              $region101: #{tpu_custom_call.1} parent=63 // pred_check
                _
              $region102: #{tpu_custom_call.1} parent=63 // pred_check_branch
                %1935 = sbr.rel target = $region104
              $region103: #{tpu_custom_call.1} parent=63 // pred_region
                _
              $region104: #{tpu_custom_call.1} parent=63 // pred_fallthru
                _
            $region64: #{tpu_custom_call.1} parent=59 // pred_fallthru
              _
            // Predicated region
            $region65: #{tpu_custom_call.1} parent=59 // pred_check
              _
            $region66: #{tpu_custom_call.1} parent=59 // pred_check_branch
              %1718 = sbr.rel target = $region68
            $region67: #{tpu_custom_call.1} parent=59 // pred_region
              %s1720 = sshrl.u32 %s1707, 5
              // While loop
              $region69: #{tpu_custom_call.1} parent=67 // loop_pre_header
                _
              $region70: #{tpu_custom_call.1} parent=67 // loop_header
                %s1722 = sphi 0, %s1724
                %p1723 = scmp.ge.s32.totalorder %s1722, %s1720
                %s1727 = sphi 0, %s1796
                %s1728 = sphi %s1672, %s1799
                %s1729 = sphi %s1711, %s1800
              $region71: #{tpu_custom_call.1} parent=67 // loop_header_branch
                %1726 = sbr.rel (%p1723) target = $region75
              $region72: #{tpu_custom_call.1} parent=67 // loop_body
                %v1730 = vld [vmem:[%s1728] sm:$0xff]
                %1731 = vst [vmem:[%s1729] sm:$0xff] %v1730
                %v1732 = vld [vmem:[%s1728 + $0x8] sm:$0xff]
                %1733 = vst [vmem:[%s1729 + $0x8] sm:$0xff] %v1732
                %v1734 = vld [vmem:[%s1728 + $0x10] sm:$0xff]
                %1735 = vst [vmem:[%s1729 + $0x10] sm:$0xff] %v1734
                %v1736 = vld [vmem:[%s1728 + $0x18] sm:$0xff]
                %1737 = vst [vmem:[%s1729 + $0x18] sm:$0xff] %v1736
                %v1738 = vld [vmem:[%s1728 + $0x20] sm:$0xff]
                %1739 = vst [vmem:[%s1729 + $0x20] sm:$0xff] %v1738
                %v1740 = vld [vmem:[%s1728 + $0x28] sm:$0xff]
                %1741 = vst [vmem:[%s1729 + $0x28] sm:$0xff] %v1740
                %v1742 = vld [vmem:[%s1728 + $0x30] sm:$0xff]
                %1743 = vst [vmem:[%s1729 + $0x30] sm:$0xff] %v1742
                %v1744 = vld [vmem:[%s1728 + $0x38] sm:$0xff]
                %1745 = vst [vmem:[%s1729 + $0x38] sm:$0xff] %v1744
                %v1746 = vld [vmem:[%s1728 + $0x40] sm:$0xff]
                %1747 = vst [vmem:[%s1729 + $0x40] sm:$0xff] %v1746
                %v1748 = vld [vmem:[%s1728 + $0x48] sm:$0xff]
                %1749 = vst [vmem:[%s1729 + $0x48] sm:$0xff] %v1748
                %v1750 = vld [vmem:[%s1728 + $0x50] sm:$0xff]
                %1751 = vst [vmem:[%s1729 + $0x50] sm:$0xff] %v1750
                %v1752 = vld [vmem:[%s1728 + $0x58] sm:$0xff]
                %1753 = vst [vmem:[%s1729 + $0x58] sm:$0xff] %v1752
                %v1754 = vld [vmem:[%s1728 + $0x60] sm:$0xff]
                %1755 = vst [vmem:[%s1729 + $0x60] sm:$0xff] %v1754
                %v1756 = vld [vmem:[%s1728 + $0x68] sm:$0xff]
                %1757 = vst [vmem:[%s1729 + $0x68] sm:$0xff] %v1756
                %v1758 = vld [vmem:[%s1728 + $0x70] sm:$0xff]
                %1759 = vst [vmem:[%s1729 + $0x70] sm:$0xff] %v1758
                %v1760 = vld [vmem:[%s1728 + $0x78] sm:$0xff]
                %1761 = vst [vmem:[%s1729 + $0x78] sm:$0xff] %v1760
                %v1762 = vld [vmem:[%s1728 + $0x80] sm:$0xff]
                %1763 = vst [vmem:[%s1729 + $0x80] sm:$0xff] %v1762
                %v1764 = vld [vmem:[%s1728 + $0x88] sm:$0xff]
                %1765 = vst [vmem:[%s1729 + $0x88] sm:$0xff] %v1764
                %v1766 = vld [vmem:[%s1728 + $0x90] sm:$0xff]
                %1767 = vst [vmem:[%s1729 + $0x90] sm:$0xff] %v1766
                %v1768 = vld [vmem:[%s1728 + $0x98] sm:$0xff]
                %1769 = vst [vmem:[%s1729 + $0x98] sm:$0xff] %v1768
                %v1770 = vld [vmem:[%s1728 + $0xa0] sm:$0xff]
                %1771 = vst [vmem:[%s1729 + $0xa0] sm:$0xff] %v1770
                %v1772 = vld [vmem:[%s1728 + $0xa8] sm:$0xff]
                %1773 = vst [vmem:[%s1729 + $0xa8] sm:$0xff] %v1772
                %v1774 = vld [vmem:[%s1728 + $0xb0] sm:$0xff]
                %1775 = vst [vmem:[%s1729 + $0xb0] sm:$0xff] %v1774
                %v1776 = vld [vmem:[%s1728 + $0xb8] sm:$0xff]
                %1777 = vst [vmem:[%s1729 + $0xb8] sm:$0xff] %v1776
                %v1778 = vld [vmem:[%s1728 + $0xc0] sm:$0xff]
                %1779 = vst [vmem:[%s1729 + $0xc0] sm:$0xff] %v1778
                %v1780 = vld [vmem:[%s1728 + $0xc8] sm:$0xff]
                %1781 = vst [vmem:[%s1729 + $0xc8] sm:$0xff] %v1780
                %v1782 = vld [vmem:[%s1728 + $0xd0] sm:$0xff]
                %1783 = vst [vmem:[%s1729 + $0xd0] sm:$0xff] %v1782
                %v1784 = vld [vmem:[%s1728 + $0xd8] sm:$0xff]
                %1785 = vst [vmem:[%s1729 + $0xd8] sm:$0xff] %v1784
                %v1786 = vld [vmem:[%s1728 + $0xe0] sm:$0xff]
                %1787 = vst [vmem:[%s1729 + $0xe0] sm:$0xff] %v1786
                %v1788 = vld [vmem:[%s1728 + $0xe8] sm:$0xff]
                %1789 = vst [vmem:[%s1729 + $0xe8] sm:$0xff] %v1788
                %v1790 = vld [vmem:[%s1728 + $0xf0] sm:$0xff]
                %1791 = vst [vmem:[%s1729 + $0xf0] sm:$0xff] %v1790
                %v1792 = vld [vmem:[%s1728 + $0xf8] sm:$0xff]
                %1793 = vst [vmem:[%s1729 + $0xf8] sm:$0xff] %v1792
                %s1794 = sadd.s32 1, %s1727
                %p1795 = scmp.ge.s32.totalorder %s1794, %s1720
                %s1796 = scalar_select %p1795, 0, %s1794
                %s1797 = smul.u32 %s1796, 256
                %s1798 = smul.u32 %s1796, 256
                %s1799 = scalar_lea.vmem %s1672, %s1797 [#allocation9]
                %s1800 = scalar_lea.vmem %s1711, %s1798
              $region73: #{tpu_custom_call.1} parent=67 // loop_footer
                %s1724 = sadd.s32 %s1722, 1
              $region74: #{tpu_custom_call.1} parent=67 // loop_footer_branch
                %1721 = sbr.rel target = $region70
              $region75: #{tpu_custom_call.1} parent=67 // loop_exit
                _
              %s1801 = sshrl.u32 %s1707, 5
              %s1802 = sand.u32 %s1707, 31
              %s1803 = smul.u32 %s1801, 32
              %s1804 = smul.u32 8, %s1803
              %s1805 = scalar_lea.vmem %s1672, %s1804 [#allocation9]
              %s1806 = smul.u32 8, %s1803
              %s1807 = scalar_lea.vmem %s1711, %s1806
              // While loop
              $region76: #{tpu_custom_call.1} parent=67 // loop_pre_header
                _
              $region77: #{tpu_custom_call.1} parent=67 // loop_header
                %s1809 = sphi 0, %s1811
                %p1810 = scmp.ge.s32.totalorder %s1809, %s1802
                %s1814 = sphi 0, %s1821
                %s1815 = sphi %s1805, %s1824
                %s1816 = sphi %s1807, %s1825
              $region78: #{tpu_custom_call.1} parent=67 // loop_header_branch
                %1813 = sbr.rel (%p1810) target = $region82
              $region79: #{tpu_custom_call.1} parent=67 // loop_body
                %v1817 = vld [vmem:[%s1815] sm:$0xff]
                %1818 = vst [vmem:[%s1816] sm:$0xff] %v1817
                %s1819 = sadd.s32 1, %s1814
                %p1820 = scmp.ge.s32.totalorder %s1819, %s1802
                %s1821 = scalar_select %p1820, 0, %s1819
                %s1822 = smul.u32 %s1821, 8
                %s1823 = smul.u32 %s1821, 8
                %s1824 = scalar_lea.vmem %s1805, %s1822 [#allocation9]
                %s1825 = scalar_lea.vmem %s1807, %s1823
              $region80: #{tpu_custom_call.1} parent=67 // loop_footer
                %s1811 = sadd.s32 %s1809, 1
              $region81: #{tpu_custom_call.1} parent=67 // loop_footer_branch
                %1808 = sbr.rel target = $region77
              $region82: #{tpu_custom_call.1} parent=67 // loop_exit
                _
            $region68: #{tpu_custom_call.1} parent=59 // pred_fallthru
              _
          $region60: #{tpu_custom_call.1} parent=55 // pred_fallthru
            _
          %1936 = vnop
        $region56: #{tpu_custom_call.1} parent=39 // pred_fallthru
          _
        // Predicated region
        $region105: #{tpu_custom_call.1} parent=39 // pred_check
          %p1937 = pneg %p207
        $region106: #{tpu_custom_call.1} parent=39 // pred_check_branch
          %1939 = sbr.rel (%p1937) target = $region108
        $region107: #{tpu_custom_call.1} parent=39 // pred_region
          %s1940 = smul.u32 32, %s27
          %s1941 = ssub.s32 63, %s1940
          %p1942 = scmp.lt.s32.totalorder %s1941, 32
          %s1943 = scalar_select %p1942, %s1941, 32
          %s1944 = smul.u32 128, %s1943
          %p1945 = scmp.ne.s32.totalorder 0, %s1944
          %s1946 = smul.addr %s1940, 8
          %s1947 = scalar_lea.vmem %s7, %s1946
          // Predicated region
          $region109: #{tpu_custom_call.1} parent=107 // pred_check
            %p1948 = pneg %p1945
          $region110: #{tpu_custom_call.1} parent=107 // pred_check_branch
            %1950 = sbr.rel (%p1948) target = $region112
          $region111: #{tpu_custom_call.1} parent=107 // pred_region
            // Predicated region
            $region113: #{tpu_custom_call.1} parent=111 // pred_check
              _
            $region114: #{tpu_custom_call.1} parent=111 // pred_check_branch
              %1952 = sbr.rel (0) target = $region116
            $region115: #{tpu_custom_call.1} parent=111 // pred_region
              // Predicated region
              $region135: #{tpu_custom_call.1} parent=115 // pred_check
                _
              $region136: #{tpu_custom_call.1} parent=115 // pred_check_branch
                %2063 = sbr.rel (0) target = $region138
              $region137: #{tpu_custom_call.1} parent=115 // pred_region
                %s2064 = sshrl.u32 %s1943, 5
                // While loop
                $region139: #{tpu_custom_call.1} parent=137 // loop_pre_header
                  _
                $region140: #{tpu_custom_call.1} parent=137 // loop_header
                  %s2066 = sphi 0, %s2068
                  %p2067 = scmp.ge.s32.totalorder %s2066, %s2064
                  %s2071 = sphi 0, %s2140
                  %s2072 = sphi %s1676, %s2143
                  %s2073 = sphi %s1947, %s2144
                $region141: #{tpu_custom_call.1} parent=137 // loop_header_branch
                  %2070 = sbr.rel (%p2067) target = $region145
                $region142: #{tpu_custom_call.1} parent=137 // loop_body
                  %v2074 = vld [vmem:[%s2072] sm:$0xff]
                  %2075 = vst [vmem:[%s2073] sm:$0xff] %v2074
                  %v2076 = vld [vmem:[%s2072 + $0x8] sm:$0xff]
                  %2077 = vst [vmem:[%s2073 + $0x8] sm:$0xff] %v2076
                  %v2078 = vld [vmem:[%s2072 + $0x10] sm:$0xff]
                  %2079 = vst [vmem:[%s2073 + $0x10] sm:$0xff] %v2078
                  %v2080 = vld [vmem:[%s2072 + $0x18] sm:$0xff]
                  %2081 = vst [vmem:[%s2073 + $0x18] sm:$0xff] %v2080
                  %v2082 = vld [vmem:[%s2072 + $0x20] sm:$0xff]
                  %2083 = vst [vmem:[%s2073 + $0x20] sm:$0xff] %v2082
                  %v2084 = vld [vmem:[%s2072 + $0x28] sm:$0xff]
                  %2085 = vst [vmem:[%s2073 + $0x28] sm:$0xff] %v2084
                  %v2086 = vld [vmem:[%s2072 + $0x30] sm:$0xff]
                  %2087 = vst [vmem:[%s2073 + $0x30] sm:$0xff] %v2086
                  %v2088 = vld [vmem:[%s2072 + $0x38] sm:$0xff]
                  %2089 = vst [vmem:[%s2073 + $0x38] sm:$0xff] %v2088
                  %v2090 = vld [vmem:[%s2072 + $0x40] sm:$0xff]
                  %2091 = vst [vmem:[%s2073 + $0x40] sm:$0xff] %v2090
                  %v2092 = vld [vmem:[%s2072 + $0x48] sm:$0xff]
                  %2093 = vst [vmem:[%s2073 + $0x48] sm:$0xff] %v2092
                  %v2094 = vld [vmem:[%s2072 + $0x50] sm:$0xff]
                  %2095 = vst [vmem:[%s2073 + $0x50] sm:$0xff] %v2094
                  %v2096 = vld [vmem:[%s2072 + $0x58] sm:$0xff]
                  %2097 = vst [vmem:[%s2073 + $0x58] sm:$0xff] %v2096
                  %v2098 = vld [vmem:[%s2072 + $0x60] sm:$0xff]
                  %2099 = vst [vmem:[%s2073 + $0x60] sm:$0xff] %v2098
                  %v2100 = vld [vmem:[%s2072 + $0x68] sm:$0xff]
                  %2101 = vst [vmem:[%s2073 + $0x68] sm:$0xff] %v2100
                  %v2102 = vld [vmem:[%s2072 + $0x70] sm:$0xff]
                  %2103 = vst [vmem:[%s2073 + $0x70] sm:$0xff] %v2102
                  %v2104 = vld [vmem:[%s2072 + $0x78] sm:$0xff]
                  %2105 = vst [vmem:[%s2073 + $0x78] sm:$0xff] %v2104
                  %v2106 = vld [vmem:[%s2072 + $0x80] sm:$0xff]
                  %2107 = vst [vmem:[%s2073 + $0x80] sm:$0xff] %v2106
                  %v2108 = vld [vmem:[%s2072 + $0x88] sm:$0xff]
                  %2109 = vst [vmem:[%s2073 + $0x88] sm:$0xff] %v2108
                  %v2110 = vld [vmem:[%s2072 + $0x90] sm:$0xff]
                  %2111 = vst [vmem:[%s2073 + $0x90] sm:$0xff] %v2110
                  %v2112 = vld [vmem:[%s2072 + $0x98] sm:$0xff]
                  %2113 = vst [vmem:[%s2073 + $0x98] sm:$0xff] %v2112
                  %v2114 = vld [vmem:[%s2072 + $0xa0] sm:$0xff]
                  %2115 = vst [vmem:[%s2073 + $0xa0] sm:$0xff] %v2114
                  %v2116 = vld [vmem:[%s2072 + $0xa8] sm:$0xff]
                  %2117 = vst [vmem:[%s2073 + $0xa8] sm:$0xff] %v2116
                  %v2118 = vld [vmem:[%s2072 + $0xb0] sm:$0xff]
                  %2119 = vst [vmem:[%s2073 + $0xb0] sm:$0xff] %v2118
                  %v2120 = vld [vmem:[%s2072 + $0xb8] sm:$0xff]
                  %2121 = vst [vmem:[%s2073 + $0xb8] sm:$0xff] %v2120
                  %v2122 = vld [vmem:[%s2072 + $0xc0] sm:$0xff]
                  %2123 = vst [vmem:[%s2073 + $0xc0] sm:$0xff] %v2122
                  %v2124 = vld [vmem:[%s2072 + $0xc8] sm:$0xff]
                  %2125 = vst [vmem:[%s2073 + $0xc8] sm:$0xff] %v2124
                  %v2126 = vld [vmem:[%s2072 + $0xd0] sm:$0xff]
                  %2127 = vst [vmem:[%s2073 + $0xd0] sm:$0xff] %v2126
                  %v2128 = vld [vmem:[%s2072 + $0xd8] sm:$0xff]
                  %2129 = vst [vmem:[%s2073 + $0xd8] sm:$0xff] %v2128
                  %v2130 = vld [vmem:[%s2072 + $0xe0] sm:$0xff]
                  %2131 = vst [vmem:[%s2073 + $0xe0] sm:$0xff] %v2130
                  %v2132 = vld [vmem:[%s2072 + $0xe8] sm:$0xff]
                  %2133 = vst [vmem:[%s2073 + $0xe8] sm:$0xff] %v2132
                  %v2134 = vld [vmem:[%s2072 + $0xf0] sm:$0xff]
                  %2135 = vst [vmem:[%s2073 + $0xf0] sm:$0xff] %v2134
                  %v2136 = vld [vmem:[%s2072 + $0xf8] sm:$0xff]
                  %2137 = vst [vmem:[%s2073 + $0xf8] sm:$0xff] %v2136
                  %s2138 = sadd.s32 1, %s2071
                  %p2139 = scmp.ge.s32.totalorder %s2138, %s2064
                  %s2140 = scalar_select %p2139, 0, %s2138
                  %s2141 = smul.u32 %s2140, 256
                  %s2142 = smul.u32 %s2140, 256
                  %s2143 = scalar_lea.vmem %s1676, %s2141 [#allocation10]
                  %s2144 = scalar_lea.vmem %s1947, %s2142
                $region143: #{tpu_custom_call.1} parent=137 // loop_footer
                  %s2068 = sadd.s32 %s2066, 1
                $region144: #{tpu_custom_call.1} parent=137 // loop_footer_branch
                  %2065 = sbr.rel target = $region140
                $region145: #{tpu_custom_call.1} parent=137 // loop_exit
                  _
                %s2145 = sshrl.u32 %s1943, 5
                %s2146 = sand.u32 %s1943, 31
                %s2147 = smul.u32 %s2145, 32
                %s2148 = smul.u32 8, %s2147
                %s2149 = scalar_lea.vmem %s1676, %s2148 [#allocation10]
                %s2150 = smul.u32 8, %s2147
                %s2151 = scalar_lea.vmem %s1947, %s2150
                // While loop
                $region146: #{tpu_custom_call.1} parent=137 // loop_pre_header
                  _
                $region147: #{tpu_custom_call.1} parent=137 // loop_header
                  %s2153 = sphi 0, %s2155
                  %p2154 = scmp.ge.s32.totalorder %s2153, %s2146
                  %s2158 = sphi 0, %s2165
                  %s2159 = sphi %s2149, %s2168
                  %s2160 = sphi %s2151, %s2169
                $region148: #{tpu_custom_call.1} parent=137 // loop_header_branch
                  %2157 = sbr.rel (%p2154) target = $region152
                $region149: #{tpu_custom_call.1} parent=137 // loop_body
                  %v2161 = vld [vmem:[%s2159] sm:$0xff]
                  %2162 = vst [vmem:[%s2160] sm:$0xff] %v2161
                  %s2163 = sadd.s32 1, %s2158
                  %p2164 = scmp.ge.s32.totalorder %s2163, %s2146
                  %s2165 = scalar_select %p2164, 0, %s2163
                  %s2166 = smul.u32 %s2165, 8
                  %s2167 = smul.u32 %s2165, 8
                  %s2168 = scalar_lea.vmem %s2149, %s2166 [#allocation10]
                  %s2169 = scalar_lea.vmem %s2151, %s2167
                $region150: #{tpu_custom_call.1} parent=137 // loop_footer
                  %s2155 = sadd.s32 %s2153, 1
                $region151: #{tpu_custom_call.1} parent=137 // loop_footer_branch
                  %2152 = sbr.rel target = $region147
                $region152: #{tpu_custom_call.1} parent=137 // loop_exit
                  _
              $region138: #{tpu_custom_call.1} parent=115 // pred_fallthru
                _
              // Predicated region
              $region153: #{tpu_custom_call.1} parent=115 // pred_check
                _
              $region154: #{tpu_custom_call.1} parent=115 // pred_check_branch
                %2171 = sbr.rel target = $region156
              $region155: #{tpu_custom_call.1} parent=115 // pred_region
                _
              $region156: #{tpu_custom_call.1} parent=115 // pred_fallthru
                _
            $region116: #{tpu_custom_call.1} parent=111 // pred_fallthru
              _
            // Predicated region
            $region117: #{tpu_custom_call.1} parent=111 // pred_check
              _
            $region118: #{tpu_custom_call.1} parent=111 // pred_check_branch
              %1954 = sbr.rel target = $region120
            $region119: #{tpu_custom_call.1} parent=111 // pred_region
              %s1956 = sshrl.u32 %s1943, 5
              // While loop
              $region121: #{tpu_custom_call.1} parent=119 // loop_pre_header
                _
              $region122: #{tpu_custom_call.1} parent=119 // loop_header
                %s1958 = sphi 0, %s1960
                %p1959 = scmp.ge.s32.totalorder %s1958, %s1956
                %s1963 = sphi 0, %s2032
                %s1964 = sphi %s1676, %s2035
                %s1965 = sphi %s1947, %s2036
              $region123: #{tpu_custom_call.1} parent=119 // loop_header_branch
                %1962 = sbr.rel (%p1959) target = $region127
              $region124: #{tpu_custom_call.1} parent=119 // loop_body
                %v1966 = vld [vmem:[%s1964] sm:$0xff]
                %1967 = vst [vmem:[%s1965] sm:$0xff] %v1966
                %v1968 = vld [vmem:[%s1964 + $0x8] sm:$0xff]
                %1969 = vst [vmem:[%s1965 + $0x8] sm:$0xff] %v1968
                %v1970 = vld [vmem:[%s1964 + $0x10] sm:$0xff]
                %1971 = vst [vmem:[%s1965 + $0x10] sm:$0xff] %v1970
                %v1972 = vld [vmem:[%s1964 + $0x18] sm:$0xff]
                %1973 = vst [vmem:[%s1965 + $0x18] sm:$0xff] %v1972
                %v1974 = vld [vmem:[%s1964 + $0x20] sm:$0xff]
                %1975 = vst [vmem:[%s1965 + $0x20] sm:$0xff] %v1974
                %v1976 = vld [vmem:[%s1964 + $0x28] sm:$0xff]
                %1977 = vst [vmem:[%s1965 + $0x28] sm:$0xff] %v1976
                %v1978 = vld [vmem:[%s1964 + $0x30] sm:$0xff]
                %1979 = vst [vmem:[%s1965 + $0x30] sm:$0xff] %v1978
                %v1980 = vld [vmem:[%s1964 + $0x38] sm:$0xff]
                %1981 = vst [vmem:[%s1965 + $0x38] sm:$0xff] %v1980
                %v1982 = vld [vmem:[%s1964 + $0x40] sm:$0xff]
                %1983 = vst [vmem:[%s1965 + $0x40] sm:$0xff] %v1982
                %v1984 = vld [vmem:[%s1964 + $0x48] sm:$0xff]
                %1985 = vst [vmem:[%s1965 + $0x48] sm:$0xff] %v1984
                %v1986 = vld [vmem:[%s1964 + $0x50] sm:$0xff]
                %1987 = vst [vmem:[%s1965 + $0x50] sm:$0xff] %v1986
                %v1988 = vld [vmem:[%s1964 + $0x58] sm:$0xff]
                %1989 = vst [vmem:[%s1965 + $0x58] sm:$0xff] %v1988
                %v1990 = vld [vmem:[%s1964 + $0x60] sm:$0xff]
                %1991 = vst [vmem:[%s1965 + $0x60] sm:$0xff] %v1990
                %v1992 = vld [vmem:[%s1964 + $0x68] sm:$0xff]
                %1993 = vst [vmem:[%s1965 + $0x68] sm:$0xff] %v1992
                %v1994 = vld [vmem:[%s1964 + $0x70] sm:$0xff]
                %1995 = vst [vmem:[%s1965 + $0x70] sm:$0xff] %v1994
                %v1996 = vld [vmem:[%s1964 + $0x78] sm:$0xff]
                %1997 = vst [vmem:[%s1965 + $0x78] sm:$0xff] %v1996
                %v1998 = vld [vmem:[%s1964 + $0x80] sm:$0xff]
                %1999 = vst [vmem:[%s1965 + $0x80] sm:$0xff] %v1998
                %v2000 = vld [vmem:[%s1964 + $0x88] sm:$0xff]
                %2001 = vst [vmem:[%s1965 + $0x88] sm:$0xff] %v2000
                %v2002 = vld [vmem:[%s1964 + $0x90] sm:$0xff]
                %2003 = vst [vmem:[%s1965 + $0x90] sm:$0xff] %v2002
                %v2004 = vld [vmem:[%s1964 + $0x98] sm:$0xff]
                %2005 = vst [vmem:[%s1965 + $0x98] sm:$0xff] %v2004
                %v2006 = vld [vmem:[%s1964 + $0xa0] sm:$0xff]
                %2007 = vst [vmem:[%s1965 + $0xa0] sm:$0xff] %v2006
                %v2008 = vld [vmem:[%s1964 + $0xa8] sm:$0xff]
                %2009 = vst [vmem:[%s1965 + $0xa8] sm:$0xff] %v2008
                %v2010 = vld [vmem:[%s1964 + $0xb0] sm:$0xff]
                %2011 = vst [vmem:[%s1965 + $0xb0] sm:$0xff] %v2010
                %v2012 = vld [vmem:[%s1964 + $0xb8] sm:$0xff]
                %2013 = vst [vmem:[%s1965 + $0xb8] sm:$0xff] %v2012
                %v2014 = vld [vmem:[%s1964 + $0xc0] sm:$0xff]
                %2015 = vst [vmem:[%s1965 + $0xc0] sm:$0xff] %v2014
                %v2016 = vld [vmem:[%s1964 + $0xc8] sm:$0xff]
                %2017 = vst [vmem:[%s1965 + $0xc8] sm:$0xff] %v2016
                %v2018 = vld [vmem:[%s1964 + $0xd0] sm:$0xff]
                %2019 = vst [vmem:[%s1965 + $0xd0] sm:$0xff] %v2018
                %v2020 = vld [vmem:[%s1964 + $0xd8] sm:$0xff]
                %2021 = vst [vmem:[%s1965 + $0xd8] sm:$0xff] %v2020
                %v2022 = vld [vmem:[%s1964 + $0xe0] sm:$0xff]
                %2023 = vst [vmem:[%s1965 + $0xe0] sm:$0xff] %v2022
                %v2024 = vld [vmem:[%s1964 + $0xe8] sm:$0xff]
                %2025 = vst [vmem:[%s1965 + $0xe8] sm:$0xff] %v2024
                %v2026 = vld [vmem:[%s1964 + $0xf0] sm:$0xff]
                %2027 = vst [vmem:[%s1965 + $0xf0] sm:$0xff] %v2026
                %v2028 = vld [vmem:[%s1964 + $0xf8] sm:$0xff]
                %2029 = vst [vmem:[%s1965 + $0xf8] sm:$0xff] %v2028
                %s2030 = sadd.s32 1, %s1963
                %p2031 = scmp.ge.s32.totalorder %s2030, %s1956
                %s2032 = scalar_select %p2031, 0, %s2030
                %s2033 = smul.u32 %s2032, 256
                %s2034 = smul.u32 %s2032, 256
                %s2035 = scalar_lea.vmem %s1676, %s2033 [#allocation10]
                %s2036 = scalar_lea.vmem %s1947, %s2034
              $region125: #{tpu_custom_call.1} parent=119 // loop_footer
                %s1960 = sadd.s32 %s1958, 1
              $region126: #{tpu_custom_call.1} parent=119 // loop_footer_branch
                %1957 = sbr.rel target = $region122
              $region127: #{tpu_custom_call.1} parent=119 // loop_exit
                _
              %s2037 = sshrl.u32 %s1943, 5
              %s2038 = sand.u32 %s1943, 31
              %s2039 = smul.u32 %s2037, 32
              %s2040 = smul.u32 8, %s2039
              %s2041 = scalar_lea.vmem %s1676, %s2040 [#allocation10]
              %s2042 = smul.u32 8, %s2039
              %s2043 = scalar_lea.vmem %s1947, %s2042
              // While loop
              $region128: #{tpu_custom_call.1} parent=119 // loop_pre_header
                _
              $region129: #{tpu_custom_call.1} parent=119 // loop_header
                %s2045 = sphi 0, %s2047
                %p2046 = scmp.ge.s32.totalorder %s2045, %s2038
                %s2050 = sphi 0, %s2057
                %s2051 = sphi %s2041, %s2060
                %s2052 = sphi %s2043, %s2061
              $region130: #{tpu_custom_call.1} parent=119 // loop_header_branch
                %2049 = sbr.rel (%p2046) target = $region134
              $region131: #{tpu_custom_call.1} parent=119 // loop_body
                %v2053 = vld [vmem:[%s2051] sm:$0xff]
                %2054 = vst [vmem:[%s2052] sm:$0xff] %v2053
                %s2055 = sadd.s32 1, %s2050
                %p2056 = scmp.ge.s32.totalorder %s2055, %s2038
                %s2057 = scalar_select %p2056, 0, %s2055
                %s2058 = smul.u32 %s2057, 8
                %s2059 = smul.u32 %s2057, 8
                %s2060 = scalar_lea.vmem %s2041, %s2058 [#allocation10]
                %s2061 = scalar_lea.vmem %s2043, %s2059
              $region132: #{tpu_custom_call.1} parent=119 // loop_footer
                %s2047 = sadd.s32 %s2045, 1
              $region133: #{tpu_custom_call.1} parent=119 // loop_footer_branch
                %2044 = sbr.rel target = $region129
              $region134: #{tpu_custom_call.1} parent=119 // loop_exit
                _
            $region120: #{tpu_custom_call.1} parent=111 // pred_fallthru
              _
          $region112: #{tpu_custom_call.1} parent=107 // pred_fallthru
            _
          %2172 = vnop
        $region108: #{tpu_custom_call.1} parent=39 // pred_fallthru
          _
      $region40: #{tpu_custom_call.1} parent=5 // pred_fallthru
        _
      %p2173 = scmp.le.s32.totalorder 2, %s22
      // Predicated region
      $region157: #{tpu_custom_call.1} parent=5 // pred_check
        %p2174 = pneg %p2173
      $region158: #{tpu_custom_call.1} parent=5 // pred_check_branch
        %2176 = sbr.rel (%p2174) target = $region160
      $region159: #{tpu_custom_call.1} parent=5 // pred_region
        %s2177 = ssub.s32 %s22, 2
        // Predicated region
        $region161: #{tpu_custom_call.1} parent=159 // pred_check
          %p2178 = pneg %p161
        $region162: #{tpu_custom_call.1} parent=159 // pred_check_branch
          %2180 = sbr.rel (%p2178) target = $region164
        $region163: #{tpu_custom_call.1} parent=159 // pred_region
          %s2181 = sand.u32 %s146, 1
          %s2182 = scalar_lea.sflag [#allocation5], %s2181
          %s2183 = sand.u32 %s146, 1
          %s2184 = smul.addr %s2183, 512
          %s2185 = scalar_lea.vmem [#allocation8], %s2184
          %2186 = dma.done %s2182, 8192
        $region164: #{tpu_custom_call.1} parent=159 // pred_fallthru
          _
        // Predicated region
        $region165: #{tpu_custom_call.1} parent=159 // pred_check
          %p2187 = pneg %p187
        $region166: #{tpu_custom_call.1} parent=159 // pred_check_branch
          %2189 = sbr.rel (%p2187) target = $region168
        $region167: #{tpu_custom_call.1} parent=159 // pred_region
          %s2190 = sand.u32 %s172, 1
          %s2191 = sand.u32 %s172, 1
          %s2192 = smul.addr %s2191, 256
          %s2193 = scalar_lea.vmem [#allocation9], %s2192
        $region168: #{tpu_custom_call.1} parent=159 // pred_fallthru
          _
        // Predicated region
        $region169: #{tpu_custom_call.1} parent=159 // pred_check
          %p2194 = pneg %p213
        $region170: #{tpu_custom_call.1} parent=159 // pred_check_branch
          %2196 = sbr.rel (%p2194) target = $region172
        $region171: #{tpu_custom_call.1} parent=159 // pred_region
          %s2197 = sand.u32 %s198, 1
          %s2198 = sand.u32 %s198, 1
          %s2199 = smul.addr %s2198, 256
          %s2200 = scalar_lea.vmem [#allocation10], %s2199
        $region172: #{tpu_custom_call.1} parent=159 // pred_fallthru
          _
      $region160: #{tpu_custom_call.1} parent=5 // pred_fallthru
        _
    $region6: #{tpu_custom_call.1} parent=1 // loop_footer
      %s26 = sadd.s32 1, %s22
    $region7: #{tpu_custom_call.1} parent=1 // loop_footer_branch
      %21 = sbr.rel target = $region3
    $region8: #{tpu_custom_call.1} parent=1 // loop_exit
      _
    %2201 = vsyncpa [#allocation4], 1
    %s2202 = scalar_lea.sflag [#allocation4], 1
    %2203 = vsyncpa %s2202, 1
    %2204 = vsyncpa [#allocation7], 1
    %2205 = vsyncpa [#allocation5], 1
    %s2206 = scalar_lea.sflag [#allocation5], 1
    %2207 = vsyncpa %s2206, 1

</llo_original>
